<compile_context>
chip_gen: v5e
topology: v5e:2x2
jax: 0.10.0
libtpu: 0.0.40
codegen_flags: <defaults>
</compile_context>

<pallas_src>
import functools

import jax
import jax.numpy as jnp
import numpy as np
from jax.experimental import pallas as pl
from jax.experimental.pallas import tpu as pltpu


# ----------------------------------------------------------------------------
# Kernel 1: MaxPool2d(kernel=11, stride=4, padding=2), vectorized.
# ----------------------------------------------------------------------------
def _maxpool_kernel(x_ref, o_ref, rm_ref, rmt_ref, *, H, W, out_h, out_w):
    """Max pool over both spatial axes for one block of channels.

    x_ref:   (Cb, H, W)          input block
    o_ref:   (Cb, out_w, out_h)  output block (spatially transposed)
    rm_ref:  (Cb, out_h, W)      scratch: row-pooled rows
    rmt_ref: (Cb, W, out_h)      scratch: row-pooled rows, transposed

    Decomposition (specific to kernel=11 / stride=4 / pad=2):
      window(o) = rows [4o-2, 4o+9)
                = {last 2 rows of group o-1} U {group o} U {group o+1}
                  U {first row of group o+2},
    where group j = rows [4j, 4j+4).  Out-of-range pieces at the borders are
    dropped, which is equivalent to -inf padding.
    """
    cb = x_ref.shape[0]
    ngh = H // 4
    ngw = W // 4

    # ---- pass 1: pool along H (sublane axis) -------------------------------
    r0 = x_ref[:, pl.ds(0, ngh, stride=4), :]          # rows 4j    (Cb,ngh,W)
    r1 = x_ref[:, pl.ds(1, ngh, stride=4), :]          # rows 4j+1
    r2 = x_ref[:, pl.ds(2, ngh, stride=4), :]          # rows 4j+2
    r3 = x_ref[:, pl.ds(3, ngh, stride=4), :]          # rows 4j+3
    tail2 = jnp.maximum(r2, r3)                        # rows {4j+2, 4j+3}
    g = jnp.maximum(jnp.maximum(r0, r1), tail2)        # full group max

    # base: full groups o and o+1
    rm_ref[...] = jnp.maximum(g[:, :out_h, :], g[:, 1:ngh, :])
    # + last two rows of group o-1 (valid for o >= 1)
    rm_ref[:, 1:, :] = jnp.maximum(rm_ref[:, 1:, :], tail2[:, :out_h - 1, :])
    # + first row of group o+2 (valid for o <= out_h-2)
    rm_ref[:, :out_h - 1, :] = jnp.maximum(rm_ref[:, :out_h - 1, :],
                                           r0[:, 2:ngh, :])

    # ---- move W onto the sublane axis: (Cb, out_h, W) -> (Cb, W, out_h) ----
    for c in range(cb):
        rmt_ref[c] = rm_ref[c].T

    # ---- pass 2: pool along W (now the sublane axis) -----------------------
    q0 = rmt_ref[:, pl.ds(0, ngw, stride=4), :]        # (Cb, ngw, out_h)
    q1 = rmt_ref[:, pl.ds(1, ngw, stride=4), :]
    q2 = rmt_ref[:, pl.ds(2, ngw, stride=4), :]
    q3 = rmt_ref[:, pl.ds(3, ngw, stride=4), :]
    tail2c = jnp.maximum(q2, q3)
    gc = jnp.maximum(jnp.maximum(q0, q1), tail2c)

    o_ref[...] = jnp.maximum(gc[:, :out_w, :], gc[:, 1:ngw, :])
    o_ref[:, 1:, :] = jnp.maximum(o_ref[:, 1:, :], tail2c[:, :out_w - 1, :])
    o_ref[:, :out_w - 1, :] = jnp.maximum(o_ref[:, :out_w - 1, :],
                                          q0[:, 2:ngw, :])


# ----------------------------------------------------------------------------
# Kernel 2: 1x1 conv + BN(batch stats) + ReLU + 1x1 conv + 3x3 avg pool.
# Operates on the lane-dense flat matrix (C, P), p = ow*out_h + oh.
# ----------------------------------------------------------------------------
def _head_kernel(pm_ref, w1_ref, b1_ref, gamma_ref, beta_ref, w2_ref, b2_ref,
                 mlo_ref, mhi_ref, o_ref, *, P, out_h, eps):
    x = pm_ref[...]                                               # (Cin, P)

    # 1x1 conv (27 -> 19) + bias.
    y = jnp.dot(w1_ref[...], x,
                preferred_element_type=jnp.float32) + b1_ref[...]  # (C1, P)

    # BatchNorm2d with batch statistics (batch = 1), two-pass variance.
    inv_n = 1.0 / float(P)
    mean = jnp.sum(y, axis=1, keepdims=True) * inv_n
    d = y - mean
    var = jnp.sum(d * d, axis=1, keepdims=True) * inv_n
    t4 = jnp.maximum(
        gamma_ref[...] * d * jax.lax.rsqrt(var + eps) + beta_ref[...], 0.0)

    # Final 1x1 conv BEFORE the (linear) avg pool; its bias is added after.
    u = jnp.dot(w2_ref[...], t4, preferred_element_type=jnp.float32)  # (C2, P)

    # 3x3 avg pool, stride 1, pad 1, count_include_pad=True, as separable
    # shift-adds.  Fast flat axis = oh (needs boundary masks because a +/-1
    # shift can cross a column boundary); slow axis = ow (shifts by out_h,
    # boundaries handled by the zero blocks from the concatenation).
    co = u.shape[0]
    zc = jnp.zeros((co, 1), jnp.float32)
    zb = jnp.zeros((co, out_h), jnp.float32)
    minus = jnp.concatenate([zc, u[:, :P - 1]], axis=1)     # u[p-1]
    plus = jnp.concatenate([u[:, 1:], zc], axis=1)          # u[p+1]
    s = u + minus * mlo_ref[...] + plus * mhi_ref[...]      # 3-tap along oh
    upw = jnp.concatenate([zb, s[:, :P - out_h]], axis=1)   # s[p-out_h]
    dwn = jnp.concatenate([s[:, out_h:], zb], axis=1)       # s[p+out_h]
    o_ref[...] = (s + upw + dwn) * (1.0 / 9.0) + b2_ref[...]


# ----------------------------------------------------------------------------
# Wrappers
# ----------------------------------------------------------------------------
def _maxpool_pallas(x3):
    """x3: (C, H, W) -> (C, out_w, out_h)  (max pool, spatially transposed)."""
    C, H, W = x3.shape
    assert H % 4 == 0 and W % 4 == 0 and H >= 12 and W >= 12
    out_h = (H + 2 * 2 - 11) // 4 + 1
    out_w = (W + 2 * 2 - 11) // 4 + 1
    cb = 9 if C % 9 == 0 else (3 if C % 3 == 0 else 1)

    cost = pl.CostEstimate(
        flops=5 * C * H * W,
        transcendentals=0,
        bytes_accessed=4 * (C * H * W + C * out_h * out_w))

    return pl.pallas_call(
        functools.partial(_maxpool_kernel, H=H, W=W, out_h=out_h, out_w=out_w),
        out_shape=jax.ShapeDtypeStruct((C, out_w, out_h), jnp.float32),
        grid=(C // cb,),
        in_specs=[pl.BlockSpec((cb, H, W), lambda i: (i, 0, 0))],
        out_specs=pl.BlockSpec((cb, out_w, out_h), lambda i: (i, 0, 0)),
        scratch_shapes=[pltpu.VMEM((cb, out_h, W), jnp.float32),
                        pltpu.VMEM((cb, W, out_h), jnp.float32)],
        compiler_params=pltpu.CompilerParams(
            dimension_semantics=("parallel",),
            vmem_limit_bytes=48 * 1024 * 1024),
        cost_estimate=cost,
    )(x3)


def _head_pallas(pm_flat, params, mask_lo, mask_hi, out_h):
    C, P = pm_flat.shape
    c1 = params["w1"].shape[0]
    c2 = params["w2"].shape[0]
    vmem = pl.BlockSpec(memory_space=pltpu.MemorySpace.VMEM)

    cost = pl.CostEstimate(
        flops=2 * P * (c1 * C + c2 * c1) + 16 * P * c1 + 8 * P * c2,
        transcendentals=c1,
        bytes_accessed=4 * ((C + c2 + 2) * P + c1 * C + c2 * c1 + 4 * c1 + c2))

    return pl.pallas_call(
        functools.partial(_head_kernel, P=P, out_h=out_h, eps=1e-5),
        out_shape=jax.ShapeDtypeStruct((c2, P), jnp.float32),
        in_specs=[vmem] * 9,
        out_specs=vmem,
        compiler_params=pltpu.CompilerParams(
            vmem_limit_bytes=32 * 1024 * 1024),
        cost_estimate=cost,
    )(pm_flat, params["w1"], params["b1"], params["gamma"], params["beta"],
      params["w2"], params["b2"], mask_lo, mask_hi)


@jax.jit
def model_forward(x, params):
    # x: (1, 27, H, W) float32 (NCHW); like the reference input, batch == 1.
    assert x.shape[0] == 1
    _, C, H, W = x.shape
    out_h = (H + 2 * 2 - 11) // 4 + 1
    out_w = (W + 2 * 2 - 11) // 4 + 1
    P = out_h * out_w
    c2 = params["w2"].shape[0]

    # Stage 1: max pool (Pallas, gridded over channel blocks).
    pm = _maxpool_pallas(x[0])                    # (C, out_w, out_h)

    # Free HBM reshape to the lane-dense (C, P) matrix, p = ow*out_h + oh.
    pm_flat = pm.reshape(C, P)

    # Boundary masks for the separable 3x3 average pool (trace-time constants).
    fast = np.arange(P) % out_h
    mask_lo = jnp.asarray((fast > 0).astype(np.float32).reshape(1, P))
    mask_hi = jnp.asarray((fast < out_h - 1).astype(np.float32).reshape(1, P))

    # Stage 2: conv + BN + ReLU + conv + avg pool (one tiny Pallas call).
    out_flat = _head_pallas(pm_flat, params, mask_lo, mask_hi, out_h)  # (13,P)

    # (13, P) -> (1, 13, out_h, out_w, 1)   (the final unsqueeze(-1))
    out = out_flat.reshape(c2, out_w, out_h).transpose(0, 2, 1)
    return out[None, ..., None]


# ----------------------------------------------------------------------------
# Pure-JAX reference (for correctness check)
# ----------------------------------------------------------------------------
def reference_forward(x, params):
    xp = jnp.pad(x, ((0, 0), (0, 0), (2, 2), (2, 2)),
                 constant_values=-jnp.inf)
    t1 = jax.lax.reduce_window(xp, -jnp.inf, jax.lax.max,
                               (1, 1, 11, 11), (1, 1, 4, 4), "VALID")
    t2 = jnp.einsum("oc,nchw->nohw", params["w1"], t1) \
        + params["b1"].reshape(1, -1, 1, 1)
    mean = jnp.mean(t2, axis=(0, 2, 3), keepdims=True)
    var = jnp.mean(jnp.square(t2 - mean), axis=(0, 2, 3), keepdims=True)
    t3 = params["gamma"].reshape(1, -1, 1, 1) * (t2 - mean) \
        * jax.lax.rsqrt(var + 1e-5) + params["beta"].reshape(1, -1, 1, 1)
    t4 = jnp.maximum(t3, 0.0)
    t4p = jnp.pad(t4, ((0, 0), (0, 0), (1, 1), (1, 1)))
    t5 = jax.lax.reduce_window(t4p, 0.0, jax.lax.add,
                               (1, 1, 3, 3), (1, 1, 1, 1), "VALID") / 9.0
    t6 = jnp.einsum("oc,nchw->nohw", params["w2"], t5) \
        + params["b2"].reshape(1, -1, 1, 1)
    return t6[..., None]


if __name__ == "__main__":
    key = jax.random.PRNGKey(0)
    k1, k2, k3, k4, k5 = jax.random.split(key, 5)

    # Small, non-square spatial size; channel counts are fixed by the convs.
    x = jax.random.normal(k1, (1, 27, 64, 96), dtype=jnp.float32)

    params = {
        "w1": 0.1 * jax.random.normal(k2, (19, 27), dtype=jnp.float32),
        "b1": 0.1 * jax.random.normal(k3, (19, 1), dtype=jnp.float32),
        "gamma": jnp.ones((19, 1), dtype=jnp.float32),   # BN default init
        "beta": jnp.zeros((19, 1), dtype=jnp.float32),
        "w2": 0.1 * jax.random.normal(k4, (13, 19), dtype=jnp.float32),
        "b2": 0.1 * jax.random.normal(k5, (13, 1), dtype=jnp.float32),
    }

    out = jax.block_until_ready(model_forward(x, params))

    assert out.shape == (1, 13, 15, 23, 1), out.shape
    ref = reference_forward(x, params)
    np.testing.assert_allclose(np.asarray(out), np.asarray(ref),
                               rtol=1e-4, atol=2e-4)
    print("KERNEL_OK")
</pallas_src>

<mosaic_0001>
module attributes {stable_mosaic.version = 11 : i64} {
  func.func @_maxpool_kernel(%arg0: i32, %arg1: memref<9x64x96xf32, #tpu.memory_space<vmem>>, %arg2: memref<9x23x15xf32, #tpu.memory_space<vmem>>, %arg3: memref<9x15x96xf32, #tpu.memory_space<vmem>>, %arg4: memref<9x96x15xf32, #tpu.memory_space<vmem>>) attributes {dimension_semantics = [#tpu.dimension_semantics<parallel>], iteration_bounds = array<i64: 3>, scalar_prefetch = 0 : i64, scratch_operands = 2 : i64, tpu.core_type = #tpu.core_type<tc>, window_params = [{transform_indices = @transform_0, window_bounds = array<i64: 9, 64, 96>}, {transform_indices = @transform_1, window_bounds = array<i64: 9, 23, 15>}]} {
    %c0 = arith.constant 0 : index
    %c0_0 = arith.constant 0 : index
    %c0_1 = arith.constant 0 : index
    %0 = tpu.strided_load %arg1[%c0, %c0_0, %c0_1] {strides = array<i32: 1, 4, 1>} : memref<9x64x96xf32, #tpu.memory_space<vmem>>, vector<9x16x96xf32>
    %c0_2 = arith.constant 0 : index
    %c1 = arith.constant 1 : index
    %c0_3 = arith.constant 0 : index
    %1 = tpu.strided_load %arg1[%c0_2, %c1, %c0_3] {strides = array<i32: 1, 4, 1>} : memref<9x64x96xf32, #tpu.memory_space<vmem>>, vector<9x16x96xf32>
    %c0_4 = arith.constant 0 : index
    %c2 = arith.constant 2 : index
    %c0_5 = arith.constant 0 : index
    %2 = tpu.strided_load %arg1[%c0_4, %c2, %c0_5] {strides = array<i32: 1, 4, 1>} : memref<9x64x96xf32, #tpu.memory_space<vmem>>, vector<9x16x96xf32>
    %c0_6 = arith.constant 0 : index
    %c3 = arith.constant 3 : index
    %c0_7 = arith.constant 0 : index
    %3 = tpu.strided_load %arg1[%c0_6, %c3, %c0_7] {strides = array<i32: 1, 4, 1>} : memref<9x64x96xf32, #tpu.memory_space<vmem>>, vector<9x16x96xf32>
    %4 = arith.maximumf %2, %3 : vector<9x16x96xf32>
    %5 = arith.maximumf %0, %1 : vector<9x16x96xf32>
    %6 = arith.maximumf %5, %4 : vector<9x16x96xf32>
    %7 = vector.extract_strided_slice %6 {offsets = [0, 0, 0], sizes = [9, 15, 96], strides = [1, 1, 1]} : vector<9x16x96xf32> to vector<9x15x96xf32>
    %8 = vector.extract_strided_slice %6 {offsets = [0, 1, 0], sizes = [9, 15, 96], strides = [1, 1, 1]} : vector<9x16x96xf32> to vector<9x15x96xf32>
    %9 = arith.maximumf %7, %8 : vector<9x15x96xf32>
    %c0_8 = arith.constant 0 : index
    %c0_9 = arith.constant 0 : index
    %c0_10 = arith.constant 0 : index
    %10 = vector.load %arg3[%c0_8, %c0_9, %c0_10] : memref<9x15x96xf32, #tpu.memory_space<vmem>>, vector<9x15x96xf32>
    tpu.vector_store %arg3[%c0_8, %c0_9, %c0_10], %9 {strides = array<i32>} : memref<9x15x96xf32, #tpu.memory_space<vmem>>, vector<9x15x96xf32>,
    %c0_11 = arith.constant 0 : index
    %c1_12 = arith.constant 1 : index
    %c0_13 = arith.constant 0 : index
    %11 = vector.load %arg3[%c0_11, %c1_12, %c0_13] : memref<9x15x96xf32, #tpu.memory_space<vmem>>, vector<9x14x96xf32>
    %12 = vector.extract_strided_slice %4 {offsets = [0, 0, 0], sizes = [9, 14, 96], strides = [1, 1, 1]} : vector<9x16x96xf32> to vector<9x14x96xf32>
    %13 = arith.maximumf %11, %12 : vector<9x14x96xf32>
    %c0_14 = arith.constant 0 : index
    %c1_15 = arith.constant 1 : index
    %c0_16 = arith.constant 0 : index
    %14 = vector.load %arg3[%c0_14, %c1_15, %c0_16] : memref<9x15x96xf32, #tpu.memory_space<vmem>>, vector<9x14x96xf32>
    tpu.vector_store %arg3[%c0_14, %c1_15, %c0_16], %13 {strides = array<i32>} : memref<9x15x96xf32, #tpu.memory_space<vmem>>, vector<9x14x96xf32>,
    %c0_17 = arith.constant 0 : index
    %c0_18 = arith.constant 0 : index
    %c0_19 = arith.constant 0 : index
    %15 = vector.load %arg3[%c0_17, %c0_18, %c0_19] : memref<9x15x96xf32, #tpu.memory_space<vmem>>, vector<9x14x96xf32>
    %16 = vector.extract_strided_slice %0 {offsets = [0, 2, 0], sizes = [9, 14, 96], strides = [1, 1, 1]} : vector<9x16x96xf32> to vector<9x14x96xf32>
    %17 = arith.maximumf %15, %16 : vector<9x14x96xf32>
    %c0_20 = arith.constant 0 : index
    %c0_21 = arith.constant 0 : index
    %c0_22 = arith.constant 0 : index
    %18 = vector.load %arg3[%c0_20, %c0_21, %c0_22] : memref<9x15x96xf32, #tpu.memory_space<vmem>>, vector<9x14x96xf32>
    tpu.vector_store %arg3[%c0_20, %c0_21, %c0_22], %17 {strides = array<i32>} : memref<9x15x96xf32, #tpu.memory_space<vmem>>, vector<9x14x96xf32>,
    %c0_23 = arith.constant 0 : index
    %c0_24 = arith.constant 0 : index
    %c0_25 = arith.constant 0 : index
    %19 = vector.load %arg3[%c0_23, %c0_24, %c0_25] : memref<9x15x96xf32, #tpu.memory_space<vmem>>, vector<1x15x96xf32>
    %20 = vector.shape_cast %19 : vector<1x15x96xf32> to vector<15x96xf32>
    %21 = tpu.transpose %20, [1, 0] : vector<15x96xf32> -> vector<96x15xf32>
    %c0_26 = arith.constant 0 : index
    %c0_27 = arith.constant 0 : index
    %c0_28 = arith.constant 0 : index
    %22 = vector.load %arg4[%c0_26, %c0_27, %c0_28] : memref<9x96x15xf32, #tpu.memory_space<vmem>>, vector<1x96x15xf32>
    %23 = vector.shape_cast %22 : vector<1x96x15xf32> to vector<96x15xf32>
    %24 = vector.shape_cast %21 : vector<96x15xf32> to vector<1x96x15xf32>
    tpu.vector_store %arg4[%c0_26, %c0_27, %c0_28], %24 {strides = array<i32>} : memref<9x96x15xf32, #tpu.memory_space<vmem>>, vector<1x96x15xf32>,
    %c1_29 = arith.constant 1 : index
    %c0_30 = arith.constant 0 : index
    %c0_31 = arith.constant 0 : index
    %25 = vector.load %arg3[%c1_29, %c0_30, %c0_31] : memref<9x15x96xf32, #tpu.memory_space<vmem>>, vector<1x15x96xf32>
    %26 = vector.shape_cast %25 : vector<1x15x96xf32> to vector<15x96xf32>
    %27 = tpu.transpose %26, [1, 0] : vector<15x96xf32> -> vector<96x15xf32>
    %c1_32 = arith.constant 1 : index
    %c0_33 = arith.constant 0 : index
    %c0_34 = arith.constant 0 : index
    %28 = vector.load %arg4[%c1_32, %c0_33, %c0_34] : memref<9x96x15xf32, #tpu.memory_space<vmem>>, vector<1x96x15xf32>
    %29 = vector.shape_cast %28 : vector<1x96x15xf32> to vector<96x15xf32>
    %30 = vector.shape_cast %27 : vector<96x15xf32> to vector<1x96x15xf32>
    tpu.vector_store %arg4[%c1_32, %c0_33, %c0_34], %30 {strides = array<i32>} : memref<9x96x15xf32, #tpu.memory_space<vmem>>, vector<1x96x15xf32>,
    %c2_35 = arith.constant 2 : index
    %c0_36 = arith.constant 0 : index
    %c0_37 = arith.constant 0 : index
    %31 = vector.load %arg3[%c2_35, %c0_36, %c0_37] : memref<9x15x96xf32, #tpu.memory_space<vmem>>, vector<1x15x96xf32>
    %32 = vector.shape_cast %31 : vector<1x15x96xf32> to vector<15x96xf32>
    %33 = tpu.transpose %32, [1, 0] : vector<15x96xf32> -> vector<96x15xf32>
    %c2_38 = arith.constant 2 : index
    %c0_39 = arith.constant 0 : index
    %c0_40 = arith.constant 0 : index
    %34 = vector.load %arg4[%c2_38, %c0_39, %c0_40] : memref<9x96x15xf32, #tpu.memory_space<vmem>>, vector<1x96x15xf32>
    %35 = vector.shape_cast %34 : vector<1x96x15xf32> to vector<96x15xf32>
    %36 = vector.shape_cast %33 : vector<96x15xf32> to vector<1x96x15xf32>
    tpu.vector_store %arg4[%c2_38, %c0_39, %c0_40], %36 {strides = array<i32>} : memref<9x96x15xf32, #tpu.memory_space<vmem>>, vector<1x96x15xf32>,
    %c3_41 = arith.constant 3 : index
    %c0_42 = arith.constant 0 : index
    %c0_43 = arith.constant 0 : index
    %37 = vector.load %arg3[%c3_41, %c0_42, %c0_43] : memref<9x15x96xf32, #tpu.memory_space<vmem>>, vector<1x15x96xf32>
    %38 = vector.shape_cast %37 : vector<1x15x96xf32> to vector<15x96xf32>
    %39 = tpu.transpose %38, [1, 0] : vector<15x96xf32> -> vector<96x15xf32>
    %c3_44 = arith.constant 3 : index
    %c0_45 = arith.constant 0 : index
    %c0_46 = arith.constant 0 : index
    %40 = vector.load %arg4[%c3_44, %c0_45, %c0_46] : memref<9x96x15xf32, #tpu.memory_space<vmem>>, vector<1x96x15xf32>
    %41 = vector.shape_cast %40 : vector<1x96x15xf32> to vector<96x15xf32>
    %42 = vector.shape_cast %39 : vector<96x15xf32> to vector<1x96x15xf32>
    tpu.vector_store %arg4[%c3_44, %c0_45, %c0_46], %42 {strides = array<i32>} : memref<9x96x15xf32, #tpu.memory_space<vmem>>, vector<1x96x15xf32>,
    %c4 = arith.constant 4 : index
    %c0_47 = arith.constant 0 : index
    %c0_48 = arith.constant 0 : index
    %43 = vector.load %arg3[%c4, %c0_47, %c0_48] : memref<9x15x96xf32, #tpu.memory_space<vmem>>, vector<1x15x96xf32>
    %44 = vector.shape_cast %43 : vector<1x15x96xf32> to vector<15x96xf32>
    %45 = tpu.transpose %44, [1, 0] : vector<15x96xf32> -> vector<96x15xf32>
    %c4_49 = arith.constant 4 : index
    %c0_50 = arith.constant 0 : index
    %c0_51 = arith.constant 0 : index
    %46 = vector.load %arg4[%c4_49, %c0_50, %c0_51] : memref<9x96x15xf32, #tpu.memory_space<vmem>>, vector<1x96x15xf32>
    %47 = vector.shape_cast %46 : vector<1x96x15xf32> to vector<96x15xf32>
    %48 = vector.shape_cast %45 : vector<96x15xf32> to vector<1x96x15xf32>
    tpu.vector_store %arg4[%c4_49, %c0_50, %c0_51], %48 {strides = array<i32>} : memref<9x96x15xf32, #tpu.memory_space<vmem>>, vector<1x96x15xf32>,
    %c5 = arith.constant 5 : index
    %c0_52 = arith.constant 0 : index
    %c0_53 = arith.constant 0 : index
    %49 = vector.load %arg3[%c5, %c0_52, %c0_53] : memref<9x15x96xf32, #tpu.memory_space<vmem>>, vector<1x15x96xf32>
    %50 = vector.shape_cast %49 : vector<1x15x96xf32> to vector<15x96xf32>
    %51 = tpu.transpose %50, [1, 0] : vector<15x96xf32> -> vector<96x15xf32>
    %c5_54 = arith.constant 5 : index
    %c0_55 = arith.constant 0 : index
    %c0_56 = arith.constant 0 : index
    %52 = vector.load %arg4[%c5_54, %c0_55, %c0_56] : memref<9x96x15xf32, #tpu.memory_space<vmem>>, vector<1x96x15xf32>
    %53 = vector.shape_cast %52 : vector<1x96x15xf32> to vector<96x15xf32>
    %54 = vector.shape_cast %51 : vector<96x15xf32> to vector<1x96x15xf32>
    tpu.vector_store %arg4[%c5_54, %c0_55, %c0_56], %54 {strides = array<i32>} : memref<9x96x15xf32, #tpu.memory_space<vmem>>, vector<1x96x15xf32>,
    %c6 = arith.constant 6 : index
    %c0_57 = arith.constant 0 : index
    %c0_58 = arith.constant 0 : index
    %55 = vector.load %arg3[%c6, %c0_57, %c0_58] : memref<9x15x96xf32, #tpu.memory_space<vmem>>, vector<1x15x96xf32>
    %56 = vector.shape_cast %55 : vector<1x15x96xf32> to vector<15x96xf32>
    %57 = tpu.transpose %56, [1, 0] : vector<15x96xf32> -> vector<96x15xf32>
    %c6_59 = arith.constant 6 : index
    %c0_60 = arith.constant 0 : index
    %c0_61 = arith.constant 0 : index
    %58 = vector.load %arg4[%c6_59, %c0_60, %c0_61] : memref<9x96x15xf32, #tpu.memory_space<vmem>>, vector<1x96x15xf32>
    %59 = vector.shape_cast %58 : vector<1x96x15xf32> to vector<96x15xf32>
    %60 = vector.shape_cast %57 : vector<96x15xf32> to vector<1x96x15xf32>
    tpu.vector_store %arg4[%c6_59, %c0_60, %c0_61], %60 {strides = array<i32>} : memref<9x96x15xf32, #tpu.memory_space<vmem>>, vector<1x96x15xf32>,
    %c7 = arith.constant 7 : index
    %c0_62 = arith.constant 0 : index
    %c0_63 = arith.constant 0 : index
    %61 = vector.load %arg3[%c7, %c0_62, %c0_63] : memref<9x15x96xf32, #tpu.memory_space<vmem>>, vector<1x15x96xf32>
    %62 = vector.shape_cast %61 : vector<1x15x96xf32> to vector<15x96xf32>
    %63 = tpu.transpose %62, [1, 0] : vector<15x96xf32> -> vector<96x15xf32>
    %c7_64 = arith.constant 7 : index
    %c0_65 = arith.constant 0 : index
    %c0_66 = arith.constant 0 : index
    %64 = vector.load %arg4[%c7_64, %c0_65, %c0_66] : memref<9x96x15xf32, #tpu.memory_space<vmem>>, vector<1x96x15xf32>
    %65 = vector.shape_cast %64 : vector<1x96x15xf32> to vector<96x15xf32>
    %66 = vector.shape_cast %63 : vector<96x15xf32> to vector<1x96x15xf32>
    tpu.vector_store %arg4[%c7_64, %c0_65, %c0_66], %66 {strides = array<i32>} : memref<9x96x15xf32, #tpu.memory_space<vmem>>, vector<1x96x15xf32>,
    %c8 = arith.constant 8 : index
    %c0_67 = arith.constant 0 : index
    %c0_68 = arith.constant 0 : index
    %67 = vector.load %arg3[%c8, %c0_67, %c0_68] : memref<9x15x96xf32, #tpu.memory_space<vmem>>, vector<1x15x96xf32>
    %68 = vector.shape_cast %67 : vector<1x15x96xf32> to vector<15x96xf32>
    %69 = tpu.transpose %68, [1, 0] : vector<15x96xf32> -> vector<96x15xf32>
    %c8_69 = arith.constant 8 : index
    %c0_70 = arith.constant 0 : index
    %c0_71 = arith.constant 0 : index
    %70 = vector.load %arg4[%c8_69, %c0_70, %c0_71] : memref<9x96x15xf32, #tpu.memory_space<vmem>>, vector<1x96x15xf32>
    %71 = vector.shape_cast %70 : vector<1x96x15xf32> to vector<96x15xf32>
    %72 = vector.shape_cast %69 : vector<96x15xf32> to vector<1x96x15xf32>
    tpu.vector_store %arg4[%c8_69, %c0_70, %c0_71], %72 {strides = array<i32>} : memref<9x96x15xf32, #tpu.memory_space<vmem>>, vector<1x96x15xf32>,
    %c0_72 = arith.constant 0 : index
    %c0_73 = arith.constant 0 : index
    %c0_74 = arith.constant 0 : index
    %73 = tpu.strided_load %arg4[%c0_72, %c0_73, %c0_74] {strides = array<i32: 1, 4, 1>} : memref<9x96x15xf32, #tpu.memory_space<vmem>>, vector<9x24x15xf32>
    %c0_75 = arith.constant 0 : index
    %c1_76 = arith.constant 1 : index
    %c0_77 = arith.constant 0 : index
    %74 = tpu.strided_load %arg4[%c0_75, %c1_76, %c0_77] {strides = array<i32: 1, 4, 1>} : memref<9x96x15xf32, #tpu.memory_space<vmem>>, vector<9x24x15xf32>
    %c0_78 = arith.constant 0 : index
    %c2_79 = arith.constant 2 : index
    %c0_80 = arith.constant 0 : index
    %75 = tpu.strided_load %arg4[%c0_78, %c2_79, %c0_80] {strides = array<i32: 1, 4, 1>} : memref<9x96x15xf32, #tpu.memory_space<vmem>>, vector<9x24x15xf32>
    %c0_81 = arith.constant 0 : index
    %c3_82 = arith.constant 3 : index
    %c0_83 = arith.constant 0 : index
    %76 = tpu.strided_load %arg4[%c0_81, %c3_82, %c0_83] {strides = array<i32: 1, 4, 1>} : memref<9x96x15xf32, #tpu.memory_space<vmem>>, vector<9x24x15xf32>
    %77 = arith.maximumf %75, %76 : vector<9x24x15xf32>
    %78 = arith.maximumf %73, %74 : vector<9x24x15xf32>
    %79 = arith.maximumf %78, %77 : vector<9x24x15xf32>
    %80 = vector.extract_strided_slice %79 {offsets = [0, 0, 0], sizes = [9, 23, 15], strides = [1, 1, 1]} : vector<9x24x15xf32> to vector<9x23x15xf32>
    %81 = vector.extract_strided_slice %79 {offsets = [0, 1, 0], sizes = [9, 23, 15], strides = [1, 1, 1]} : vector<9x24x15xf32> to vector<9x23x15xf32>
    %82 = arith.maximumf %80, %81 : vector<9x23x15xf32>
    %c0_84 = arith.constant 0 : index
    %c0_85 = arith.constant 0 : index
    %c0_86 = arith.constant 0 : index
    %83 = vector.load %arg2[%c0_84, %c0_85, %c0_86] : memref<9x23x15xf32, #tpu.memory_space<vmem>>, vector<9x23x15xf32>
    tpu.vector_store %arg2[%c0_84, %c0_85, %c0_86], %82 {strides = array<i32>} : memref<9x23x15xf32, #tpu.memory_space<vmem>>, vector<9x23x15xf32>,
    %c0_87 = arith.constant 0 : index
    %c1_88 = arith.constant 1 : index
    %c0_89 = arith.constant 0 : index
    %84 = vector.load %arg2[%c0_87, %c1_88, %c0_89] : memref<9x23x15xf32, #tpu.memory_space<vmem>>, vector<9x22x15xf32>
    %85 = vector.extract_strided_slice %77 {offsets = [0, 0, 0], sizes = [9, 22, 15], strides = [1, 1, 1]} : vector<9x24x15xf32> to vector<9x22x15xf32>
    %86 = arith.maximumf %84, %85 : vector<9x22x15xf32>
    %c0_90 = arith.constant 0 : index
    %c1_91 = arith.constant 1 : index
    %c0_92 = arith.constant 0 : index
    %87 = vector.load %arg2[%c0_90, %c1_91, %c0_92] : memref<9x23x15xf32, #tpu.memory_space<vmem>>, vector<9x22x15xf32>
    tpu.vector_store %arg2[%c0_90, %c1_91, %c0_92], %86 {strides = array<i32>} : memref<9x23x15xf32, #tpu.memory_space<vmem>>, vector<9x22x15xf32>,
    %c0_93 = arith.constant 0 : index
    %c0_94 = arith.constant 0 : index
    %c0_95 = arith.constant 0 : index
    %88 = vector.load %arg2[%c0_93, %c0_94, %c0_95] : memref<9x23x15xf32, #tpu.memory_space<vmem>>, vector<9x22x15xf32>
    %89 = vector.extract_strided_slice %73 {offsets = [0, 2, 0], sizes = [9, 22, 15], strides = [1, 1, 1]} : vector<9x24x15xf32> to vector<9x22x15xf32>
    %90 = arith.maximumf %88, %89 : vector<9x22x15xf32>
    %c0_96 = arith.constant 0 : index
    %c0_97 = arith.constant 0 : index
    %c0_98 = arith.constant 0 : index
    %91 = vector.load %arg2[%c0_96, %c0_97, %c0_98] : memref<9x23x15xf32, #tpu.memory_space<vmem>>, vector<9x22x15xf32>
    tpu.vector_store %arg2[%c0_96, %c0_97, %c0_98], %90 {strides = array<i32>} : memref<9x23x15xf32, #tpu.memory_space<vmem>>, vector<9x22x15xf32>,
    return
  }
  func.func @transform_0(%arg0: i32) -> (i32, i32, i32) {
    %c0_i32 = arith.constant 0 : i32
    %c0_i32_0 = arith.constant 0 : i32
    %c0_i32_1 = arith.constant 0 : i32
    return %arg0, %c0_i32, %c0_i32_0 : i32, i32, i32
  }
  func.func @transform_1(%arg0: i32) -> (i32, i32, i32) {
    %c0_i32 = arith.constant 0 : i32
    %c0_i32_0 = arith.constant 0 : i32
    %c0_i32_1 = arith.constant 0 : i32
    return %arg0, %c0_i32, %c0_i32_0 : i32, i32, i32
  }
}

module attributes {stable_mosaic.version = 11 : i64} {
  func.func @_head_kernel(%arg0: memref<27x345xf32, #tpu.memory_space<vmem>>, %arg1: memref<19x27xf32, #tpu.memory_space<vmem>>, %arg2: memref<19x1xf32, #tpu.memory_space<vmem>>, %arg3: memref<19x1xf32, #tpu.memory_space<vmem>>, %arg4: memref<19x1xf32, #tpu.memory_space<vmem>>, %arg5: memref<13x19xf32, #tpu.memory_space<vmem>>, %arg6: memref<13x1xf32, #tpu.memory_space<vmem>>, %arg7: memref<1x345xf32, #tpu.memory_space<vmem>>, %arg8: memref<1x345xf32, #tpu.memory_space<vmem>>, %arg9: memref<13x345xf32, #tpu.memory_space<vmem>>) attributes {dimension_semantics = [], scalar_prefetch = 0 : i64, scratch_operands = 0 : i64, tpu.core_type = #tpu.core_type<tc>} {
    %c0 = arith.constant 0 : index
    %c0_0 = arith.constant 0 : index
    %0 = vector.load %arg0[%c0, %c0_0] : memref<27x345xf32, #tpu.memory_space<vmem>>, vector<27x345xf32>
    %c0_1 = arith.constant 0 : index
    %c0_2 = arith.constant 0 : index
    %1 = vector.load %arg1[%c0_1, %c0_2] : memref<19x27xf32, #tpu.memory_space<vmem>>, vector<19x27xf32>
    %cst = arith.constant dense<0.000000e+00> : vector<19x345xf32>
    %2 = tpu.matmul %1, %0, %cst {dimension_numbers = #tpu.dot_dimension_numbers<[1], [0], [0], [1], [0, 0, 1, 1], [], []>} : vector<19x27xf32>, vector<27x345xf32>, vector<19x345xf32> -> vector<19x345xf32>
    %c0_3 = arith.constant 0 : index
    %c0_4 = arith.constant 0 : index
    %3 = vector.load %arg2[%c0_3, %c0_4] : memref<19x1xf32, #tpu.memory_space<vmem>>, vector<19x1xf32>
    %4 = vector.broadcast %3 : vector<19x1xf32> to vector<19x345xf32>
    %5 = arith.addf %2, %4 : vector<19x345xf32>
    %cst_5 = arith.constant dense<0.000000e+00> : vector<19xf32>
    %6 = vector.multi_reduction <add>, %5, %cst_5 [1] : vector<19x345xf32> to vector<19xf32>
    %7 = vector.shape_cast %6 : vector<19xf32> to vector<19x1xf32>
    %cst_6 = arith.constant 0.00289855083 : f32
    %8 = vector.broadcast %cst_6 : f32 to vector<19x1xf32>
    %9 = arith.mulf %7, %8 : vector<19x1xf32>
    %10 = vector.broadcast %9 : vector<19x1xf32> to vector<19x345xf32>
    %11 = arith.subf %5, %10 : vector<19x345xf32>
    %12 = arith.mulf %11, %11 : vector<19x345xf32>
    %cst_7 = arith.constant dense<0.000000e+00> : vector<19xf32>
    %13 = vector.multi_reduction <add>, %12, %cst_7 [1] : vector<19x345xf32> to vector<19xf32>
    %14 = vector.shape_cast %13 : vector<19xf32> to vector<19x1xf32>
    %cst_8 = arith.constant 0.00289855083 : f32
    %15 = vector.broadcast %cst_8 : f32 to vector<19x1xf32>
    %16 = arith.mulf %14, %15 : vector<19x1xf32>
    %c0_9 = arith.constant 0 : index
    %c0_10 = arith.constant 0 : index
    %17 = vector.load %arg3[%c0_9, %c0_10] : memref<19x1xf32, #tpu.memory_space<vmem>>, vector<19x1xf32>
    %18 = vector.broadcast %17 : vector<19x1xf32> to vector<19x345xf32>
    %19 = arith.mulf %18, %11 : vector<19x345xf32>
    %cst_11 = arith.constant 9.99999974E-6 : f32
    %20 = vector.broadcast %cst_11 : f32 to vector<19x1xf32>
    %21 = arith.addf %16, %20 : vector<19x1xf32>
    %22 = math.rsqrt %21 : vector<19x1xf32>
    %23 = vector.broadcast %22 : vector<19x1xf32> to vector<19x345xf32>
    %24 = arith.mulf %19, %23 : vector<19x345xf32>
    %c0_12 = arith.constant 0 : index
    %c0_13 = arith.constant 0 : index
    %25 = vector.load %arg4[%c0_12, %c0_13] : memref<19x1xf32, #tpu.memory_space<vmem>>, vector<19x1xf32>
    %26 = vector.broadcast %25 : vector<19x1xf32> to vector<19x345xf32>
    %27 = arith.addf %24, %26 : vector<19x345xf32>
    %cst_14 = arith.constant 0.000000e+00 : f32
    %28 = vector.broadcast %cst_14 : f32 to vector<19x345xf32>
    %29 = arith.maximumf %27, %28 : vector<19x345xf32>
    %c0_15 = arith.constant 0 : index
    %c0_16 = arith.constant 0 : index
    %30 = vector.load %arg5[%c0_15, %c0_16] : memref<13x19xf32, #tpu.memory_space<vmem>>, vector<13x19xf32>
    %cst_17 = arith.constant dense<0.000000e+00> : vector<13x345xf32>
    %31 = tpu.matmul %30, %29, %cst_17 {dimension_numbers = #tpu.dot_dimension_numbers<[1], [0], [0], [1], [0, 0, 1, 1], [], []>} : vector<13x19xf32>, vector<19x345xf32>, vector<13x345xf32> -> vector<13x345xf32>
    %cst_18 = arith.constant 0.000000e+00 : f32
    %32 = vector.broadcast %cst_18 : f32 to vector<13x1xf32>
    %cst_19 = arith.constant 0.000000e+00 : f32
    %33 = vector.broadcast %cst_19 : f32 to vector<13x15xf32>
    %34 = vector.extract_strided_slice %31 {offsets = [0, 0], sizes = [13, 344], strides = [1, 1]} : vector<13x345xf32> to vector<13x344xf32>
    %35 = tpu.concatenate %32, %34 in 1 : vector<13x1xf32>, vector<13x344xf32> -> vector<13x345xf32>
    %36 = vector.extract_strided_slice %31 {offsets = [0, 1], sizes = [13, 344], strides = [1, 1]} : vector<13x345xf32> to vector<13x344xf32>
    %37 = tpu.concatenate %36, %32 in 1 : vector<13x344xf32>, vector<13x1xf32> -> vector<13x345xf32>
    %c0_20 = arith.constant 0 : index
    %c0_21 = arith.constant 0 : index
    %38 = vector.load %arg7[%c0_20, %c0_21] : memref<1x345xf32, #tpu.memory_space<vmem>>, vector<1x345xf32>
    %39 = vector.broadcast %38 : vector<1x345xf32> to vector<13x345xf32>
    %40 = arith.mulf %35, %39 : vector<13x345xf32>
    %41 = arith.addf %31, %40 : vector<13x345xf32>
    %c0_22 = arith.constant 0 : index
    %c0_23 = arith.constant 0 : index
    %42 = vector.load %arg8[%c0_22, %c0_23] : memref<1x345xf32, #tpu.memory_space<vmem>>, vector<1x345xf32>
    %43 = vector.broadcast %42 : vector<1x345xf32> to vector<13x345xf32>
    %44 = arith.mulf %37, %43 : vector<13x345xf32>
    %45 = arith.addf %41, %44 : vector<13x345xf32>
    %46 = vector.extract_strided_slice %45 {offsets = [0, 0], sizes = [13, 330], strides = [1, 1]} : vector<13x345xf32> to vector<13x330xf32>
    %47 = tpu.concatenate %33, %46 in 1 : vector<13x15xf32>, vector<13x330xf32> -> vector<13x345xf32>
    %48 = vector.extract_strided_slice %45 {offsets = [0, 15], sizes = [13, 330], strides = [1, 1]} : vector<13x345xf32> to vector<13x330xf32>
    %49 = tpu.concatenate %48, %33 in 1 : vector<13x330xf32>, vector<13x15xf32> -> vector<13x345xf32>
    %50 = arith.addf %45, %47 : vector<13x345xf32>
    %51 = arith.addf %50, %49 : vector<13x345xf32>
    %cst_24 = arith.constant 0.111111112 : f32
    %52 = vector.broadcast %cst_24 : f32 to vector<13x345xf32>
    %53 = arith.mulf %51, %52 : vector<13x345xf32>
    %c0_25 = arith.constant 0 : index
    %c0_26 = arith.constant 0 : index
    %54 = vector.load %arg6[%c0_25, %c0_26] : memref<13x1xf32, #tpu.memory_space<vmem>>, vector<13x1xf32>
    %55 = vector.broadcast %54 : vector<13x1xf32> to vector<13x345xf32>
    %56 = arith.addf %53, %55 : vector<13x345xf32>
    %c0_27 = arith.constant 0 : index
    %c0_28 = arith.constant 0 : index
    %57 = vector.load %arg9[%c0_27, %c0_28] : memref<13x345xf32, #tpu.memory_space<vmem>>, vector<13x345xf32>
    tpu.vector_store %arg9[%c0_27, %c0_28], %56 {strides = array<i32>} : memref<13x345xf32, #tpu.memory_space<vmem>>, vector<13x345xf32>,
    return
  }
}

</mosaic_0001>

<llo_original>
// kernel: model_forward.3
$region0: #{model_forward.3}
  #allocation0 [shape = 'u32[]', space=smem, size = 0x4, offset = 0x4, fixed_abs, tag = 'smem constant byte address 0x4 - core index']
  #allocation1 [shape = 'u32[72,128]{1,0:T(1,128)}', space=vmem, size = 0x9000, scoped, tag = 'internal scratch']
  %s0 = inlined_call_operand.vmem [shape: f32[27,345], index: 0, kind: input, shape index: {}]
  %s1 = inlined_call_operand.vmem [shape: f32[19,27], index: 1, kind: input, shape index: {}]
  %s2 = inlined_call_operand.vmem [shape: f32[19,1], index: 2, kind: input, shape index: {}]
  %s3 = inlined_call_operand.vmem [shape: f32[19,1], index: 3, kind: input, shape index: {}]
  %s4 = inlined_call_operand.vmem [shape: f32[19,1], index: 4, kind: input, shape index: {}]
  %s5 = inlined_call_operand.vmem [shape: f32[13,19], index: 5, kind: input, shape index: {}]
  %s6 = inlined_call_operand.vmem [shape: f32[13,1], index: 6, kind: input, shape index: {}]
  %s7 = inlined_call_operand.vmem [shape: f32[1,345], index: 7, kind: input, shape index: {}]
  %s8 = inlined_call_operand.vmem [shape: f32[1,345], index: 8, kind: input, shape index: {}]
  %s9 = inlined_call_operand.vmem [shape: f32[13,345], index: 9, kind: output, shape index: {}]
  %s10 = sld [smem:[#allocation0]]
  $region46: #{model_forward.3} parent=0
    _
  %s12 = ssub.s32 1, %s10
  %s13 = scalar_select 0, %s12, %s10
  // Predicated region
  $region2: #{model_forward.3} parent=0 // pred_check
    _
  $region3: #{model_forward.3} parent=0 // pred_check_branch
    %15 = sbr.rel (0) target = $region5
  $region4: #{model_forward.3} parent=0 // pred_region
    _
  $region5: #{model_forward.3} parent=0 // pred_fallthru
    _
  // Predicated region
  $region6: #{model_forward.3} parent=0 // pred_check
    _
  $region7: #{model_forward.3} parent=0 // pred_check_branch
    %17 = sbr.rel (0) target = $region9
  $region8: #{model_forward.3} parent=0 // pred_region
    _
  $region9: #{model_forward.3} parent=0 // pred_fallthru
    _
  // Predicated region
  $region10: #{model_forward.3} parent=0 // pred_check
    _
  $region11: #{model_forward.3} parent=0 // pred_check_branch
    %19 = sbr.rel (0) target = $region13
  $region12: #{model_forward.3} parent=0 // pred_region
    _
  $region13: #{model_forward.3} parent=0 // pred_fallthru
    _
  // Predicated region
  $region14: #{model_forward.3} parent=0 // pred_check
    _
  $region15: #{model_forward.3} parent=0 // pred_check_branch
    %21 = sbr.rel (0) target = $region17
  $region16: #{model_forward.3} parent=0 // pred_region
    _
  $region17: #{model_forward.3} parent=0 // pred_fallthru
    _
  // Predicated region
  $region18: #{model_forward.3} parent=0 // pred_check
    _
  $region19: #{model_forward.3} parent=0 // pred_check_branch
    %23 = sbr.rel (0) target = $region21
  $region20: #{model_forward.3} parent=0 // pred_region
    _
  $region21: #{model_forward.3} parent=0 // pred_fallthru
    _
  // Predicated region
  $region22: #{model_forward.3} parent=0 // pred_check
    _
  $region23: #{model_forward.3} parent=0 // pred_check_branch
    %25 = sbr.rel (0) target = $region25
  $region24: #{model_forward.3} parent=0 // pred_region
    _
  $region25: #{model_forward.3} parent=0 // pred_fallthru
    _
  // Predicated region
  $region26: #{model_forward.3} parent=0 // pred_check
    _
  $region27: #{model_forward.3} parent=0 // pred_check_branch
    %27 = sbr.rel (0) target = $region29
  $region28: #{model_forward.3} parent=0 // pred_region
    _
  $region29: #{model_forward.3} parent=0 // pred_fallthru
    _
  // Predicated region
  $region30: #{model_forward.3} parent=0 // pred_check
    _
  $region31: #{model_forward.3} parent=0 // pred_check_branch
    %29 = sbr.rel (0) target = $region33
  $region32: #{model_forward.3} parent=0 // pred_region
    _
  $region33: #{model_forward.3} parent=0 // pred_fallthru
    _
  // Predicated region
  $region34: #{model_forward.3} parent=0 // pred_check
    _
  $region35: #{model_forward.3} parent=0 // pred_check_branch
    %31 = sbr.rel (0) target = $region37
  $region36: #{model_forward.3} parent=0 // pred_region
    _
  $region37: #{model_forward.3} parent=0 // pred_fallthru
    _
  %v32 = vld [vmem:[%s0] sm:$0xff]
  %v33 = vld [vmem:[%s0 + $0x8] sm:$0xff]
  %v34 = vld [vmem:[%s0 + $0x10] sm:$0xff]
  %v35 = vld [vmem:[%s0 + $0x18] sm:$0xff]
  %v36 = vld [vmem:[%s0 + $0x20] sm:$0xff]
  %v37 = vld [vmem:[%s0 + $0x28] sm:$0xff]
  %v38 = vld [vmem:[%s0 + $0x30] sm:$0xff]
  %v39 = vld [vmem:[%s0 + $0x38] sm:$0xff]
  %v40 = vld [vmem:[%s0 + $0x40] sm:$0xff]
  %v41 = vld [vmem:[%s0 + $0x48] sm:$0x7]
  %v42 = vld [vmem:[%s0 + $0x50] sm:$0x7]
  %v43 = vld [vmem:[%s0 + $0x58] sm:$0x7]
  %v44 = vld [vmem:[%s1] sm:$0xff]
  %v45 = vld [vmem:[%s1 + $0x8] sm:$0xff]
  %v46 = vld [vmem:[%s1 + $0x10] sm:$0x7]
  %v47 = vld [vmem:[%s2] sm:$0xff]
  %v48 = vld [vmem:[%s2 + $0x8] sm:$0xff]
  %v49 = vld [vmem:[%s2 + $0x10] sm:$0x7]
  %51 = vset.pattern.permute.xlu0 0
  %52 = vperm.xlu0 %51, %v47
  %v53 = vpop.permute.xlu0 %52
  %56 = vset.pattern.permute.xlu0 0
  %57 = vperm.xlu0 %56, %v48
  %v58 = vpop.permute.xlu0 %57
  %61 = vset.pattern.permute.xlu0 0
  %62 = vperm.xlu0 %61, %v49
  %v63 = vpop.permute.xlu0 %62
  %vm65 = vcmask 220160
  %v67 = vsel %vm65, %v44, 0
  %v70 = vsel %vm65, %v45, 0
  %v73 = vsel %vm65, %v46, 0
  %vm75 = vcmask 1042432
  %v77 = vsel %vm75, %v41, 0
  %v80 = vsel %vm75, %v42, 0
  %v83 = vsel %vm75, %v43, 0
  %85 = vmatpush.msra.mxu0 0.0
  %86 = vmatpush.msra.mxu0 0.0
  %87 = vmatpush.msra.mxu0 0.0
  %88 = vmatpush.msra.mxu0 0.0
  %89 = vmatpush.msra.mxu0 0.0
  %90 = vmatpush.msra.mxu0 0.0
  %91 = vmatpush.msra.mxu0 0.0
  %92 = vmatpush.msra.mxu0 0.0
  %93 = vmatpush.msra.mxu0 0.0
  %94 = vmatpush.msra.mxu0 0.0
  %95 = vmatpush.msra.mxu0 0.0
  %96 = vmatpush.msra.mxu0 0.0
  %97 = vmatpush.msra.mxu0 %v77
  %98 = vmatpush.msra.mxu0 %v38
  %99 = vmatpush.msra.mxu0 %v35
  %100 = vmatpush.msra.mxu0 %v32
  %101 = vmatmul.f32.gmra.mxu0 %v67
  %v102 = vpop.f32.mrf.mxu0
  %v103 = vadd.f32 %v53, %v102
  %104 = vmatmul.f32.gmra.mxu0 %v70
  %v105 = vpop.f32.mrf.mxu0
  %v106 = vadd.f32 %v58, %v105
  %107 = vmatmul.f32.gmra.mxu0 %v73
  %v108 = vpop.f32.mrf.mxu0
  %v109 = vadd.f32 %v63, %v108
  %110 = vdwg.mxu0
  %111 = vmatpush.msra.mxu0 0.0
  %112 = vmatpush.msra.mxu0 0.0
  %113 = vmatpush.msra.mxu0 0.0
  %114 = vmatpush.msra.mxu0 0.0
  %115 = vmatpush.msra.mxu0 0.0
  %116 = vmatpush.msra.mxu0 0.0
  %117 = vmatpush.msra.mxu0 0.0
  %118 = vmatpush.msra.mxu0 0.0
  %119 = vmatpush.msra.mxu0 0.0
  %120 = vmatpush.msra.mxu0 0.0
  %121 = vmatpush.msra.mxu0 0.0
  %122 = vmatpush.msra.mxu0 0.0
  %123 = vmatpush.msra.mxu0 %v80
  %124 = vmatpush.msra.mxu0 %v39
  %125 = vmatpush.msra.mxu0 %v36
  %126 = vmatpush.msra.mxu0 %v33
  %127 = vmatmul.f32.gmra.mxu0 %v67
  %v128 = vpop.f32.mrf.mxu0
  %v129 = vadd.f32 %v53, %v128
  %130 = vmatmul.f32.gmra.mxu0 %v70
  %v131 = vpop.f32.mrf.mxu0
  %v132 = vadd.f32 %v58, %v131
  %133 = vmatmul.f32.gmra.mxu0 %v73
  %v134 = vpop.f32.mrf.mxu0
  %v135 = vadd.f32 %v63, %v134
  %136 = vdwg.mxu0
  %137 = vmatpush.msra.mxu0 0.0
  %138 = vmatpush.msra.mxu0 0.0
  %139 = vmatpush.msra.mxu0 0.0
  %140 = vmatpush.msra.mxu0 0.0
  %141 = vmatpush.msra.mxu0 0.0
  %142 = vmatpush.msra.mxu0 0.0
  %143 = vmatpush.msra.mxu0 0.0
  %144 = vmatpush.msra.mxu0 0.0
  %145 = vmatpush.msra.mxu0 0.0
  %146 = vmatpush.msra.mxu0 0.0
  %147 = vmatpush.msra.mxu0 0.0
  %148 = vmatpush.msra.mxu0 0.0
  %149 = vmatpush.msra.mxu0 %v83
  %150 = vmatpush.msra.mxu0 %v40
  %151 = vmatpush.msra.mxu0 %v37
  %152 = vmatpush.msra.mxu0 %v34
  %153 = vmatmul.f32.gmra.mxu0 %v67
  %v154 = vpop.f32.mrf.mxu0
  %v155 = vadd.f32 %v53, %v154
  %156 = vmatmul.f32.gmra.mxu0 %v70
  %v157 = vpop.f32.mrf.mxu0
  %v158 = vadd.f32 %v58, %v157
  %159 = vmatmul.f32.gmra.mxu0 %v73
  %v160 = vpop.f32.mrf.mxu0
  %v161 = vadd.f32 %v63, %v160
  %162 = vdwg.mxu0
  %v163 = vadd.f32 %v103, %v129
  %vm164 = vcmask 728064
  %v165 = vsel %vm164, %v155, 0.0
  %v166 = vadd.f32 %v163, %v165
  %167 = vadd.xlane.f32.xlu0 %v166
  %v168 = vpop.xlane.xlu0 %167
  %v169 = vadd.f32 %v106, %v132
  %v170 = vsel %vm164, %v158, 0.0
  %v171 = vadd.f32 %v169, %v170
  %172 = vadd.xlane.f32.xlu0 %v171
  %v173 = vpop.xlane.xlu0 %172
  %v174 = vsel %vm75, %v109, 0.0
  %v175 = vsel %vm75, %v135, 0.0
  %v176 = vadd.f32 %v174, %v175
  %vm177 = vcmask 722944
  %v178 = vsel %vm177, %v161, 0.0
  %v179 = vadd.f32 %v176, %v178
  %180 = vadd.xlane.f32.xlu0 %v179
  %v181 = vpop.xlane.xlu0 %180
  %v182 = vmul.f32 %v168, 0.0028985508
  %v183 = vmul.f32 %v173, 0.0028985508
  %v184 = vmul.f32 %v181, 0.0028985508
  %v185 = vsub.f32 %v103, %v182
  %v186 = vsub.f32 %v129, %v182
  %v187 = vsub.f32 %v155, %v182
  %v188 = vsub.f32 %v106, %v183
  %v189 = vsub.f32 %v132, %v183
  %v190 = vsub.f32 %v158, %v183
  %v191 = vsub.f32 %v109, %v184
  %v192 = vsub.f32 %v135, %v184
  %v193 = vsub.f32 %v161, %v184
  %v194 = vmul.f32 %v185, %v185
  %v195 = vmul.f32 %v186, %v186
  %v196 = vmul.f32 %v187, %v187
  %v197 = vmul.f32 %v188, %v188
  %v198 = vmul.f32 %v189, %v189
  %v199 = vmul.f32 %v190, %v190
  %v200 = vmul.f32 %v191, %v191
  %v201 = vmul.f32 %v192, %v192
  %v202 = vmul.f32 %v193, %v193
  %v203 = vadd.f32 %v194, %v195
  %v204 = vsel %vm164, %v196, 0.0
  %v205 = vadd.f32 %v203, %v204
  %206 = vadd.xlane.f32.xlu0 %v205
  %v207 = vpop.xlane.xlu0 %206
  %v208 = vadd.f32 %v197, %v198
  %v209 = vsel %vm164, %v199, 0.0
  %v210 = vadd.f32 %v208, %v209
  %211 = vadd.xlane.f32.xlu0 %v210
  %v212 = vpop.xlane.xlu0 %211
  %v213 = vsel %vm75, %v200, 0.0
  %v214 = vsel %vm75, %v201, 0.0
  %v215 = vadd.f32 %v213, %v214
  %v216 = vsel %vm177, %v202, 0.0
  %v217 = vadd.f32 %v215, %v216
  %218 = vadd.xlane.f32.xlu0 %v217
  %v219 = vpop.xlane.xlu0 %218
  %v220 = vmul.f32 %v207, 0.0028985508
  %v221 = vmul.f32 %v212, 0.0028985508
  %v222 = vmul.f32 %v219, 0.0028985508
  %v223 = vld [vmem:[%s3] sm:$0xff]
  %v224 = vld [vmem:[%s3 + $0x8] sm:$0xff]
  %v225 = vld [vmem:[%s3 + $0x10] sm:$0x7]
  %227 = vset.pattern.permute.xlu0 0
  %228 = vperm.xlu0 %227, %v223
  %v229 = vpop.permute.xlu0 %228
  %232 = vset.pattern.permute.xlu0 0
  %233 = vperm.xlu0 %232, %v224
  %v234 = vpop.permute.xlu0 %233
  %237 = vset.pattern.permute.xlu0 0
  %238 = vperm.xlu0 %237, %v225
  %v239 = vpop.permute.xlu0 %238
  %v241 = vmul.f32 %v229, %v185
  %v242 = vmul.f32 %v229, %v186
  %v243 = vmul.f32 %v229, %v187
  %v244 = vmul.f32 %v234, %v188
  %v245 = vmul.f32 %v234, %v189
  %v246 = vmul.f32 %v234, %v190
  %v247 = vmul.f32 %v239, %v191
  %v248 = vmul.f32 %v239, %v192
  %v249 = vmul.f32 %v239, %v193
  %v250 = vadd.f32 %v220, 1e-05
  %v251 = vadd.f32 %v221, 1e-05
  %v252 = vadd.f32 %v222, 1e-05
  %v253 = vrsqrt.pop %v250
  %v254 = vmul.f32 %v253, %v250
  %v255 = vmul.f32 %v254, %v253
  %v256 = vmul.f32 0.5, %v255
  %v257 = vsub.f32 1.5, %v256
  %v258 = vmul.f32 %v253, %v257
  %vm259 = vweird.f32 %v250
  %vm260 = vweird.f32 %v253
  %vm261 = vmor %vm259, %vm260
  %v262 = vsel %vm261, %v253, %v258
  %v263 = vrsqrt.pop %v251
  %v264 = vmul.f32 %v263, %v251
  %v265 = vmul.f32 %v264, %v263
  %v266 = vmul.f32 0.5, %v265
  %v267 = vsub.f32 1.5, %v266
  %v268 = vmul.f32 %v263, %v267
  %vm269 = vweird.f32 %v251
  %vm270 = vweird.f32 %v263
  %vm271 = vmor %vm269, %vm270
  %v272 = vsel %vm271, %v263, %v268
  %v273 = vrsqrt.pop %v252
  %v274 = vmul.f32 %v273, %v252
  %v275 = vmul.f32 %v274, %v273
  %v276 = vmul.f32 0.5, %v275
  %v277 = vsub.f32 1.5, %v276
  %v278 = vmul.f32 %v273, %v277
  %vm279 = vweird.f32 %v252
  %vm280 = vweird.f32 %v273
  %vm281 = vmor %vm279, %vm280
  %v282 = vsel %vm281, %v273, %v278
  %v283 = vmul.f32 %v241, %v262
  %v284 = vmul.f32 %v242, %v262
  %v285 = vmul.f32 %v243, %v262
  %v286 = vmul.f32 %v244, %v272
  %v287 = vmul.f32 %v245, %v272
  %v288 = vmul.f32 %v246, %v272
  %v289 = vmul.f32 %v247, %v282
  %v290 = vmul.f32 %v248, %v282
  %v291 = vmul.f32 %v249, %v282
  %v292 = vld [vmem:[%s4] sm:$0xff]
  %v293 = vld [vmem:[%s4 + $0x8] sm:$0xff]
  %v294 = vld [vmem:[%s4 + $0x10] sm:$0x7]
  %296 = vset.pattern.permute.xlu0 0
  %297 = vperm.xlu0 %296, %v292
  %v298 = vpop.permute.xlu0 %297
  %301 = vset.pattern.permute.xlu0 0
  %302 = vperm.xlu0 %301, %v293
  %v303 = vpop.permute.xlu0 %302
  %306 = vset.pattern.permute.xlu0 0
  %307 = vperm.xlu0 %306, %v294
  %v308 = vpop.permute.xlu0 %307
  %v310 = vadd.f32 %v283, %v298
  %v311 = vadd.f32 %v284, %v298
  %v312 = vadd.f32 %v285, %v298
  %v313 = vadd.f32 %v286, %v303
  %v314 = vadd.f32 %v287, %v303
  %v315 = vadd.f32 %v288, %v303
  %v316 = vadd.f32 %v289, %v308
  %v317 = vadd.f32 %v290, %v308
  %v318 = vadd.f32 %v291, %v308
  %v319 = vmax.f32 %v310, 0.0
  %v320 = vmax.f32 %v311, 0.0
  %v321 = vmax.f32 %v312, 0.0
  %v322 = vmax.f32 %v313, 0.0
  %v323 = vmax.f32 %v314, 0.0
  %v324 = vmax.f32 %v315, 0.0
  %v325 = vmax.f32 %v316, 0.0
  %v326 = vmax.f32 %v317, 0.0
  %v327 = vmax.f32 %v318, 0.0
  %v328 = vld [vmem:[%s5] sm:$0xff]
  %v329 = vld [vmem:[%s5 + $0x8] sm:$0x1f]
  %vm330 = vcmask 154624
  %v332 = vsel %vm330, %v328, 0
  %v335 = vsel %vm330, %v329, 0
  %v338 = vsel %vm75, %v325, 0
  %v341 = vsel %vm75, %v326, 0
  %v344 = vsel %vm75, %v327, 0
  %346 = vmatpush.msra.mxu0 0.0
  %347 = vmatpush.msra.mxu0 0.0
  %348 = vmatpush.msra.mxu0 0.0
  %349 = vmatpush.msra.mxu0 0.0
  %350 = vmatpush.msra.mxu0 0.0
  %351 = vmatpush.msra.mxu0 0.0
  %352 = vmatpush.msra.mxu0 0.0
  %353 = vmatpush.msra.mxu0 0.0
  %354 = vmatpush.msra.mxu0 0.0
  %355 = vmatpush.msra.mxu0 0.0
  %356 = vmatpush.msra.mxu0 0.0
  %357 = vmatpush.msra.mxu0 0.0
  %358 = vmatpush.msra.mxu0 0.0
  %359 = vmatpush.msra.mxu0 %v338
  %360 = vmatpush.msra.mxu0 %v322
  %361 = vmatpush.msra.mxu0 %v319
  %362 = vmatmul.f32.gmra.mxu0 %v332
  %v363 = vpop.f32.mrf.mxu0
  %v364 = vadd.f32 0.0, %v363
  %365 = vmatmul.f32.gmra.mxu0 %v335
  %v366 = vpop.f32.mrf.mxu0
  %v367 = vadd.f32 0.0, %v366
  %368 = vdwg.mxu0
  %369 = vmatpush.msra.mxu0 0.0
  %370 = vmatpush.msra.mxu0 0.0
  %371 = vmatpush.msra.mxu0 0.0
  %372 = vmatpush.msra.mxu0 0.0
  %373 = vmatpush.msra.mxu0 0.0
  %374 = vmatpush.msra.mxu0 0.0
  %375 = vmatpush.msra.mxu0 0.0
  %376 = vmatpush.msra.mxu0 0.0
  %377 = vmatpush.msra.mxu0 0.0
  %378 = vmatpush.msra.mxu0 0.0
  %379 = vmatpush.msra.mxu0 0.0
  %380 = vmatpush.msra.mxu0 0.0
  %381 = vmatpush.msra.mxu0 0.0
  %382 = vmatpush.msra.mxu0 %v341
  %383 = vmatpush.msra.mxu0 %v323
  %384 = vmatpush.msra.mxu0 %v320
  %385 = vmatmul.f32.gmra.mxu0 %v332
  %v386 = vpop.f32.mrf.mxu0
  %v387 = vadd.f32 0.0, %v386
  %388 = vmatmul.f32.gmra.mxu0 %v335
  %v389 = vpop.f32.mrf.mxu0
  %v390 = vadd.f32 0.0, %v389
  %391 = vdwg.mxu0
  %392 = vmatpush.msra.mxu0 0.0
  %393 = vmatpush.msra.mxu0 0.0
  %394 = vmatpush.msra.mxu0 0.0
  %395 = vmatpush.msra.mxu0 0.0
  %396 = vmatpush.msra.mxu0 0.0
  %397 = vmatpush.msra.mxu0 0.0
  %398 = vmatpush.msra.mxu0 0.0
  %399 = vmatpush.msra.mxu0 0.0
  %400 = vmatpush.msra.mxu0 0.0
  %401 = vmatpush.msra.mxu0 0.0
  %402 = vmatpush.msra.mxu0 0.0
  %403 = vmatpush.msra.mxu0 0.0
  %404 = vmatpush.msra.mxu0 0.0
  %405 = vmatpush.msra.mxu0 %v344
  %406 = vmatpush.msra.mxu0 %v324
  %407 = vmatpush.msra.mxu0 %v321
  %408 = vmatmul.f32.gmra.mxu0 %v332
  %v409 = vpop.f32.mrf.mxu0
  %v410 = vadd.f32 0.0, %v409
  %411 = vmatmul.f32.gmra.mxu0 %v335
  %v412 = vpop.f32.mrf.mxu0
  %v413 = vadd.f32 0.0, %v412
  %414 = vdwg.mxu0
  %421 = vrot.lane.b32.xlu0 %v364, 1
  %v422 = vpop.permute.xlu0 %421
  %423 = vrot.lane.b32.xlu0 %v387, 1
  %v424 = vpop.permute.xlu0 %423
  %425 = vrot.lane.b32.xlu0 %v410, 1
  %v426 = vpop.permute.xlu0 %425
  %427 = vrot.lane.b32.xlu0 %v367, 1
  %v428 = vpop.permute.xlu0 %427
  %429 = vrot.lane.b32.xlu0 %v390, 1
  %v430 = vpop.permute.xlu0 %429
  %431 = vrot.lane.b32.xlu0 %v413, 1
  %v432 = vpop.permute.xlu0 %431
  %vm433 = vcmask 7168
  %v434 = vsel %vm433, %v422, %v424
  %v435 = vsel %vm433, %v424, %v426
  %v436 = vsel %vm433, %v428, %v430
  %v437 = vsel %vm433, %v430, %v432
  %v444 = vsel %vm433, 0.0, %v422
  %v445 = vsel %vm433, 0.0, %v428
  %446 = vrot.lane.b32.xlu0 %v364, 127
  %v447 = vpop.permute.xlu0 %446
  %448 = vrot.lane.b32.xlu0 %v387, 127
  %v449 = vpop.permute.xlu0 %448
  %450 = vrot.lane.b32.xlu0 %v410, 127
  %v451 = vpop.permute.xlu0 %450
  %452 = vrot.lane.b32.xlu0 %v367, 127
  %v453 = vpop.permute.xlu0 %452
  %454 = vrot.lane.b32.xlu0 %v390, 127
  %v455 = vpop.permute.xlu0 %454
  %456 = vrot.lane.b32.xlu0 %v413, 127
  %v457 = vpop.permute.xlu0 %456
  %vm458 = vcmask 1039360
  %v459 = vsel %vm458, %v447, %v449
  %v460 = vsel %vm458, %v449, %v451
  %v461 = vsel %vm458, %v453, %v455
  %v462 = vsel %vm458, %v455, %v457
  %vm469 = vcmask 719872
  %v470 = vsel %vm469, %v451, 0.0
  %v471 = vsel %vm469, %v457, 0.0
  %v472 = vld [vmem:[%s7] sm:$0x7]
  %v474 = vperm.slane %v472, 0
  %v475 = vperm.slane %v472, 1
  %v476 = vperm.slane %v472, 2
  %v480 = vmul.f32 %v444, %v474
  %v481 = vmul.f32 %v434, %v475
  %v482 = vmul.f32 %v435, %v476
  %v483 = vmul.f32 %v445, %v474
  %v484 = vmul.f32 %v436, %v475
  %v485 = vmul.f32 %v437, %v476
  %v486 = vadd.f32 %v364, %v480
  %v487 = vadd.f32 %v387, %v481
  %v488 = vadd.f32 %v410, %v482
  %v489 = vadd.f32 %v367, %v483
  %v490 = vadd.f32 %v390, %v484
  %v491 = vadd.f32 %v413, %v485
  %v492 = vld [vmem:[%s8] sm:$0x7]
  %v494 = vperm.slane %v492, 0
  %v495 = vperm.slane %v492, 1
  %v496 = vperm.slane %v492, 2
  %v500 = vmul.f32 %v459, %v494
  %v501 = vmul.f32 %v460, %v495
  %v502 = vmul.f32 %v470, %v496
  %v503 = vmul.f32 %v461, %v494
  %v504 = vmul.f32 %v462, %v495
  %v505 = vmul.f32 %v471, %v496
  %v506 = vadd.f32 %v486, %v500
  %v507 = vadd.f32 %v487, %v501
  %v508 = vadd.f32 %v488, %v502
  %v509 = vadd.f32 %v489, %v503
  %v510 = vadd.f32 %v490, %v504
  %v511 = vadd.f32 %v491, %v505
  %518 = vrot.lane.b32.xlu0 %v506, 15
  %v519 = vpop.permute.xlu0 %518
  %520 = vrot.lane.b32.xlu0 %v507, 15
  %v521 = vpop.permute.xlu0 %520
  %522 = vrot.lane.b32.xlu0 %v508, 15
  %v523 = vpop.permute.xlu0 %522
  %524 = vrot.lane.b32.xlu0 %v509, 15
  %v525 = vpop.permute.xlu0 %524
  %526 = vrot.lane.b32.xlu0 %v510, 15
  %v527 = vpop.permute.xlu0 %526
  %528 = vrot.lane.b32.xlu0 %v511, 15
  %v529 = vpop.permute.xlu0 %528
  %vm530 = vcmask 121856
  %v531 = vsel %vm530, %v519, %v521
  %v532 = vsel %vm530, %v521, %v523
  %v533 = vsel %vm530, %v525, %v527
  %v534 = vsel %vm530, %v527, %v529
  %v541 = vsel %vm530, 0.0, %v519
  %v542 = vsel %vm530, 0.0, %v525
  %543 = vrot.lane.b32.xlu0 %v506, 113
  %v544 = vpop.permute.xlu0 %543
  %545 = vrot.lane.b32.xlu0 %v507, 113
  %v546 = vpop.permute.xlu0 %545
  %547 = vrot.lane.b32.xlu0 %v508, 113
  %v548 = vpop.permute.xlu0 %547
  %549 = vrot.lane.b32.xlu0 %v509, 113
  %v550 = vpop.permute.xlu0 %549
  %551 = vrot.lane.b32.xlu0 %v510, 113
  %v552 = vpop.permute.xlu0 %551
  %553 = vrot.lane.b32.xlu0 %v511, 113
  %v554 = vpop.permute.xlu0 %553
  %vm555 = vcmask 924672
  %v556 = vsel %vm555, %v544, %v546
  %v557 = vsel %vm555, %v546, %v548
  %v558 = vsel %vm555, %v550, %v552
  %v559 = vsel %vm555, %v552, %v554
  %vm566 = vcmask 605184
  %v567 = vsel %vm566, %v548, 0.0
  %v568 = vsel %vm566, %v554, 0.0
  %v569 = vadd.f32 %v506, %v541
  %v570 = vadd.f32 %v507, %v531
  %v571 = vadd.f32 %v508, %v532
  %v572 = vadd.f32 %v509, %v542
  %v573 = vadd.f32 %v510, %v533
  %v574 = vadd.f32 %v511, %v534
  %v575 = vadd.f32 %v569, %v556
  %v576 = vadd.f32 %v570, %v557
  %v577 = vadd.f32 %v571, %v567
  %v578 = vadd.f32 %v572, %v558
  %v579 = vadd.f32 %v573, %v559
  %v580 = vadd.f32 %v574, %v568
  %v581 = vmul.f32 %v575, 0.11111111
  %v582 = vmul.f32 %v576, 0.11111111
  %v583 = vmul.f32 %v577, 0.11111111
  %v584 = vmul.f32 %v578, 0.11111111
  %v585 = vmul.f32 %v579, 0.11111111
  %v586 = vmul.f32 %v580, 0.11111111
  %v587 = vld [vmem:[%s6] sm:$0xff]
  %v588 = vld [vmem:[%s6 + $0x8] sm:$0x1f]
  %590 = vset.pattern.permute.xlu0 0
  %591 = vperm.xlu0 %590, %v587
  %v592 = vpop.permute.xlu0 %591
  %595 = vset.pattern.permute.xlu0 0
  %596 = vperm.xlu0 %595, %v588
  %v597 = vpop.permute.xlu0 %596
  %v599 = vadd.f32 %v581, %v592
  %v600 = vadd.f32 %v582, %v592
  %v601 = vadd.f32 %v583, %v592
  %v602 = vadd.f32 %v584, %v597
  %v603 = vadd.f32 %v585, %v597
  %v604 = vadd.f32 %v586, %v597
  %605 = vst [vmem:[%s9] sm:$0xff] %v599
  %606 = vst [vmem:[%s9 + $0x8] sm:$0xff] %v600
  %607 = vst.msk [vmem:[%s9 + $0x10] sm:$0xff] %vm164, %v601
  %608 = vst [vmem:[%s9 + $0x18] sm:$0x1f] %v602
  %609 = vst [vmem:[%s9 + $0x20] sm:$0x1f] %v603
  %vm610 = vcmask 724992
  %611 = vst.msk [vmem:[%s9 + $0x28] sm:$0x1f] %vm610, %v604
  // Predicated region
  $region38: #{model_forward.3} parent=0 // pred_check
    _
  $region39: #{model_forward.3} parent=0 // pred_check_branch
    %613 = sbr.rel (0) target = $region41
  $region40: #{model_forward.3} parent=0 // pred_region
    _
  $region41: #{model_forward.3} parent=0 // pred_fallthru
    _
  // Predicated region
  $region42: #{model_forward.3} parent=0 // pred_check
    _
  $region43: #{model_forward.3} parent=0 // pred_check_branch
    %615 = sbr.rel (0) target = $region45
  $region44: #{model_forward.3} parent=0 // pred_region
    _
  $region45: #{model_forward.3} parent=0 // pred_fallthru
    _

// kernel: model_forward.2
$region0: #{model_forward.2}
  #allocation0 [shape = 'u32[]', space=smem, size = 0x4, offset = 0x4, fixed_abs, tag = 'smem constant byte address 0x4 - core index']
  #allocation1 [shape = 'u32[72,128]{1,0:T(1,128)}', space=vmem, size = 0x9000, scoped, tag = 'internal scratch']
  #allocation2 [shape = 'f32[9,15,96]{2,1,0:T(8,128)}', space=vmem, size = 0x12000, scoped, tag = 'scratch operand']
  #allocation3 [shape = 'f32[9,96,15]{2,1,0:T(8,128)}', space=vmem, size = 0x6c000, scoped, tag = 'scratch operand']
  %s0 = inlined_call_operand.hbm [shape: f32[27,64,96], index: 0, kind: input, shape index: {}]
  %s1 = inlined_call_operand.vmem [shape: f32[27,23,15], index: 1, kind: output, shape index: {}]
  %s2 = sld [smem:[#allocation0]]
  $region41: #{model_forward.2} parent=0
    _
  %s4 = ssub.s32 1, %s2
  %s5 = scalar_select 0, %s4, %s2
  $region1: #{model_forward.2} parent=0
    #allocation4 [shape = 'u8[589824]{0}', space=vmem, size = 0x90000, scoped, tag = 'input window, operand 0']
    #allocation5 [shape = 's32[2]{0}', space=sflag, size = 0x8, scoped, tag = 'scoped memory for model_forward.2']
    %6 = vsyncpa [#allocation5], 0
    %s7 = scalar_lea.sflag [#allocation5], 1
    %8 = vsyncpa %s7, 0
    loop: start=0, step=1, limit=5
    $region2: #{model_forward.2} parent=1 // loop_pre_header
      _
    $region3: #{model_forward.2} parent=1 // loop_header
      %s10 = sphi 0, %s14
      %p11 = scmp.ge.s32.totalorder %s10, 5
      %s20 = sphi 0, %s22
      %s23 = sphi 0, %s20
      %s24 = sphi 0, %s23
      %s40 = sphi 0, %s24
      %s46 = sphi 0, %s48
      %s49 = sphi 0, %s46
      %s50 = sphi 0, %s49
      %s66 = sphi 0, %s50
    $region4: #{model_forward.2} parent=1 // loop_header_branch
      %13 = sbr.rel (%p11) target = $region8
    $region5: #{model_forward.2} parent=1 // loop_body
      %s15 = ssub.s32 %s10, 1
      %s16 = ssub.s32 %s10, 2
      %s17 = sadd.s32 %s10, 1
      %s18 = ssub.s32 %s10, %s17
      %p19 = scmp.eq.s32.totalorder %s18, 0
      %s21 = sadd.s32 %s20, 1
      %s22 = scalar_select %p19, %s20, %s21
      %p25 = pneg %p19
      %p26 = scmp.eq.s32.totalorder %s10, 2
      %p27 = por %p25, %p26
      %p28 = scmp.ne.s32.totalorder %s20, %s23
      %p29 = scmp.eq.s32.totalorder %s10, 0
      %p30 = por %p28, %p29
      %p31 = scmp.ne.s32.totalorder %s20, %s23
      %p32 = scmp.eq.s32.totalorder %s15, 2
      %p33 = por %p31, %p32
      %p34 = scmp.ne.s32.totalorder %s23, %s24
      %p35 = scmp.eq.s32.totalorder %s15, 0
      %p36 = por %p34, %p35
      %p37 = scmp.ne.s32.totalorder %s23, %s24
      %p38 = scmp.eq.s32.totalorder %s16, 2
      %p39 = por %p37, %p38
      %p41 = scmp.ne.s32.totalorder %s24, %s40
      %p42 = scmp.eq.s32.totalorder %s16, 0
      %p43 = por %p41, %p42
      %s44 = ssub.s32 %s10, %s17
      %p45 = scmp.eq.s32.totalorder %s44, 0
      %s47 = sadd.s32 %s46, 1
      %s48 = scalar_select %p45, %s46, %s47
      %p51 = pneg %p45
      %p52 = scmp.eq.s32.totalorder %s10, 2
      %p53 = por %p51, %p52
      %p54 = scmp.ne.s32.totalorder %s46, %s49
      %p55 = scmp.eq.s32.totalorder %s10, 0
      %p56 = por %p54, %p55
      %p57 = scmp.ne.s32.totalorder %s46, %s49
      %p58 = scmp.eq.s32.totalorder %s15, 2
      %p59 = por %p57, %p58
      %p60 = scmp.ne.s32.totalorder %s49, %s50
      %p61 = scmp.eq.s32.totalorder %s15, 0
      %p62 = por %p60, %p61
      %p63 = scmp.ne.s32.totalorder %s49, %s50
      %p64 = scmp.eq.s32.totalorder %s16, 2
      %p65 = por %p63, %p64
      %p67 = scmp.ne.s32.totalorder %s50, %s66
      %p68 = scmp.eq.s32.totalorder %s16, 0
      %p69 = por %p67, %p68
      %p70 = scmp.le.s32.totalorder 1, %s10
      %p71 = scmp.lt.s32.totalorder %s10, 4
      %p72 = pnand %p70, %p71
      %p73 = pneg %p72
      // Predicated region
      $region9: #{model_forward.2} parent=5 // pred_check
        _
      $region10: #{model_forward.2} parent=5 // pred_check_branch
        %75 = sbr.rel (%p72) target = $region12
      $region11: #{model_forward.2} parent=5 // pred_region
        %s76 = ssub.s32 %s10, 1
      $region12: #{model_forward.2} parent=5 // pred_fallthru
        _
      %p77 = scmp.lt.s32.totalorder %s10, 3
      // Predicated region
      $region13: #{model_forward.2} parent=5 // pred_check
        %p78 = pneg %p77
      $region14: #{model_forward.2} parent=5 // pred_check_branch
        %80 = sbr.rel (%p78) target = $region16
      $region15: #{model_forward.2} parent=5 // pred_region
        // Predicated region
        $region17: #{model_forward.2} parent=15 // pred_check
          %p81 = pneg %p30
        $region18: #{model_forward.2} parent=15 // pred_check_branch
          %83 = sbr.rel (%p81) target = $region20
        $region19: #{model_forward.2} parent=15 // pred_region
          %s84 = sand.u32 %s20, 1
          %s85 = scalar_lea.sflag [#allocation5], %s84
          %s86 = sand.u32 %s20, 1
          %s87 = smul.addr %s86, 576
          %s88 = scalar_lea.vmem [#allocation4], %s87
          %s89 = smul.u32 9, %s10
          %91 = vsyncadd %s85, 0
          %s92 = smul.addr %s89, 8
          %s93 = smul.addr %s92, 8
          %s94 = scalar_lea.hbm %s0, %s93
          %s95 = sshll.u32 %s94, 4
          %s96 = int_to_ptr.hbm [resolvable:$true] %s95
          %s97 = sshll.u32 %s88, 4
          %s98 = int_to_ptr.vmem [resolvable:$true] %s97
          %103 = dma.hbm_to_vmem [thread:$0]  %s96, 9216, %s98, %s85, 128, 128, 8
        $region20: #{model_forward.2} parent=15 // pred_fallthru
          _
      $region16: #{model_forward.2} parent=5 // pred_fallthru
        _
      %p104 = scmp.le.s32.totalorder 1, %s10
      %p105 = scmp.lt.s32.totalorder %s10, 4
      %p106 = pnand %p104, %p105
      %p107 = pneg %p106
      // Predicated region
      $region21: #{model_forward.2} parent=5 // pred_check
        _
      $region22: #{model_forward.2} parent=5 // pred_check_branch
        %109 = sbr.rel (%p106) target = $region24
      $region23: #{model_forward.2} parent=5 // pred_region
        %s110 = ssub.s32 %s10, 1
        %s111 = sand.u32 %s23, 1
        %s112 = scalar_lea.sflag [#allocation5], %s111
        %s113 = sand.u32 %s23, 1
        %s114 = smul.addr %s113, 576
        %s115 = scalar_lea.vmem [#allocation4], %s114
        // Predicated region
        $region25: #{model_forward.2} parent=23 // pred_check
          %p116 = pneg %p36
        $region26: #{model_forward.2} parent=23 // pred_check_branch
          %118 = sbr.rel (%p116) target = $region28
        $region27: #{model_forward.2} parent=23 // pred_region
          %120 = dma.done %s112, 9216
        $region28: #{model_forward.2} parent=23 // pred_fallthru
          _
        %s121 = sand.u32 %s23, 1
        %s122 = scalar_lea.sflag [#allocation5], %s121
        %s123 = sand.u32 %s23, 1
        %s124 = smul.addr %s123, 576
        %s125 = scalar_lea.vmem [#allocation4], %s124
        %p126 = pneg %p36
        %p127 = pneg %p33
        %p128 = pneg %p62
        %p129 = pneg %p59
        %s130 = smul.u32 9, %s15
        %p131 = scmp.lt.s32.totalorder %s130, 26
        %s132 = scalar_select %p131, %s130, 26
        %s133 = smul.addr %s132, 3
        %s134 = smul.addr %s133, 8
        %s135 = scalar_lea.vmem %s1, %s134
        %s136 = smul.u32 9, %s15
        %s137 = smul.u32 9, %s15
        %p138 = scmp.lt.s32.totalorder %s137, 26
        %s139 = scalar_select %p138, %s137, 26
        %s140 = smul.addr %s139, 3
        %s141 = smul.addr %s140, 8
        %s142 = scalar_lea.vmem %s1, %s141
        %s143 = smul.u32 9, %s15
        %v144 = vld [vmem:[%s115] ss:$4 sm:$0xff]
        %s145 = scalar_lea.vmem %s115, 32 [#allocation4]
        %v146 = vld [vmem:[%s145] ss:$4 sm:$0xff]
        %s147 = scalar_lea.vmem %s115, 64 [#allocation4]
        %v148 = vld [vmem:[%s147] ss:$4 sm:$0xff]
        %s149 = scalar_lea.vmem %s115, 96 [#allocation4]
        %v150 = vld [vmem:[%s149] ss:$4 sm:$0xff]
        %s151 = scalar_lea.vmem %s115, 128 [#allocation4]
        %v152 = vld [vmem:[%s151] ss:$4 sm:$0xff]
        %s153 = scalar_lea.vmem %s115, 160 [#allocation4]
        %v154 = vld [vmem:[%s153] ss:$4 sm:$0xff]
        %s155 = scalar_lea.vmem %s115, 192 [#allocation4]
        %v156 = vld [vmem:[%s155] ss:$4 sm:$0xff]
        %s157 = scalar_lea.vmem %s115, 224 [#allocation4]
        %v158 = vld [vmem:[%s157] ss:$4 sm:$0xff]
        %s159 = scalar_lea.vmem %s115, 256 [#allocation4]
        %v160 = vld [vmem:[%s159] ss:$4 sm:$0xff]
        %s161 = scalar_lea.vmem %s115, 288 [#allocation4]
        %v162 = vld [vmem:[%s161] ss:$4 sm:$0xff]
        %s163 = scalar_lea.vmem %s115, 320 [#allocation4]
        %v164 = vld [vmem:[%s163] ss:$4 sm:$0xff]
        %s165 = scalar_lea.vmem %s115, 352 [#allocation4]
        %v166 = vld [vmem:[%s165] ss:$4 sm:$0xff]
        %s167 = scalar_lea.vmem %s115, 384 [#allocation4]
        %v168 = vld [vmem:[%s167] ss:$4 sm:$0xff]
        %s169 = scalar_lea.vmem %s115, 416 [#allocation4]
        %v170 = vld [vmem:[%s169] ss:$4 sm:$0xff]
        %s171 = scalar_lea.vmem %s115, 448 [#allocation4]
        %v172 = vld [vmem:[%s171] ss:$4 sm:$0xff]
        %s173 = scalar_lea.vmem %s115, 480 [#allocation4]
        %v174 = vld [vmem:[%s173] ss:$4 sm:$0xff]
        %s175 = scalar_lea.vmem %s115, 512 [#allocation4]
        %v176 = vld [vmem:[%s175] ss:$4 sm:$0xff]
        %s177 = scalar_lea.vmem %s115, 544 [#allocation4]
        %v178 = vld [vmem:[%s177] ss:$4 sm:$0xff]
        %s179 = scalar_lea.vmem %s115, 1 [#allocation4]
        %v180 = vld [vmem:[%s179] ss:$4 sm:$0xff]
        %s181 = scalar_lea.vmem %s115, 33 [#allocation4]
        %v182 = vld [vmem:[%s181] ss:$4 sm:$0xff]
        %s183 = scalar_lea.vmem %s115, 65 [#allocation4]
        %v184 = vld [vmem:[%s183] ss:$4 sm:$0xff]
        %s185 = scalar_lea.vmem %s115, 97 [#allocation4]
        %v186 = vld [vmem:[%s185] ss:$4 sm:$0xff]
        %s187 = scalar_lea.vmem %s115, 129 [#allocation4]
        %v188 = vld [vmem:[%s187] ss:$4 sm:$0xff]
        %s189 = scalar_lea.vmem %s115, 161 [#allocation4]
        %v190 = vld [vmem:[%s189] ss:$4 sm:$0xff]
        %s191 = scalar_lea.vmem %s115, 193 [#allocation4]
        %v192 = vld [vmem:[%s191] ss:$4 sm:$0xff]
        %s193 = scalar_lea.vmem %s115, 225 [#allocation4]
        %v194 = vld [vmem:[%s193] ss:$4 sm:$0xff]
        %s195 = scalar_lea.vmem %s115, 257 [#allocation4]
        %v196 = vld [vmem:[%s195] ss:$4 sm:$0xff]
        %s197 = scalar_lea.vmem %s115, 289 [#allocation4]
        %v198 = vld [vmem:[%s197] ss:$4 sm:$0xff]
        %s199 = scalar_lea.vmem %s115, 321 [#allocation4]
        %v200 = vld [vmem:[%s199] ss:$4 sm:$0xff]
        %s201 = scalar_lea.vmem %s115, 353 [#allocation4]
        %v202 = vld [vmem:[%s201] ss:$4 sm:$0xff]
        %s203 = scalar_lea.vmem %s115, 385 [#allocation4]
        %v204 = vld [vmem:[%s203] ss:$4 sm:$0xff]
        %s205 = scalar_lea.vmem %s115, 417 [#allocation4]
        %v206 = vld [vmem:[%s205] ss:$4 sm:$0xff]
        %s207 = scalar_lea.vmem %s115, 449 [#allocation4]
        %v208 = vld [vmem:[%s207] ss:$4 sm:$0xff]
        %s209 = scalar_lea.vmem %s115, 481 [#allocation4]
        %v210 = vld [vmem:[%s209] ss:$4 sm:$0xff]
        %s211 = scalar_lea.vmem %s115, 513 [#allocation4]
        %v212 = vld [vmem:[%s211] ss:$4 sm:$0xff]
        %s213 = scalar_lea.vmem %s115, 545 [#allocation4]
        %v214 = vld [vmem:[%s213] ss:$4 sm:$0xff]
        %s215 = scalar_lea.vmem %s115, 2 [#allocation4]
        %v216 = vld [vmem:[%s215] ss:$4 sm:$0xff]
        %s217 = scalar_lea.vmem %s115, 34 [#allocation4]
        %v218 = vld [vmem:[%s217] ss:$4 sm:$0xff]
        %s219 = scalar_lea.vmem %s115, 66 [#allocation4]
        %v220 = vld [vmem:[%s219] ss:$4 sm:$0xff]
        %s221 = scalar_lea.vmem %s115, 98 [#allocation4]
        %v222 = vld [vmem:[%s221] ss:$4 sm:$0xff]
        %s223 = scalar_lea.vmem %s115, 130 [#allocation4]
        %v224 = vld [vmem:[%s223] ss:$4 sm:$0xff]
        %s225 = scalar_lea.vmem %s115, 162 [#allocation4]
        %v226 = vld [vmem:[%s225] ss:$4 sm:$0xff]
        %s227 = scalar_lea.vmem %s115, 194 [#allocation4]
        %v228 = vld [vmem:[%s227] ss:$4 sm:$0xff]
        %s229 = scalar_lea.vmem %s115, 226 [#allocation4]
        %v230 = vld [vmem:[%s229] ss:$4 sm:$0xff]
        %s231 = scalar_lea.vmem %s115, 258 [#allocation4]
        %v232 = vld [vmem:[%s231] ss:$4 sm:$0xff]
        %s233 = scalar_lea.vmem %s115, 290 [#allocation4]
        %v234 = vld [vmem:[%s233] ss:$4 sm:$0xff]
        %s235 = scalar_lea.vmem %s115, 322 [#allocation4]
        %v236 = vld [vmem:[%s235] ss:$4 sm:$0xff]
        %s237 = scalar_lea.vmem %s115, 354 [#allocation4]
        %v238 = vld [vmem:[%s237] ss:$4 sm:$0xff]
        %s239 = scalar_lea.vmem %s115, 386 [#allocation4]
        %v240 = vld [vmem:[%s239] ss:$4 sm:$0xff]
        %s241 = scalar_lea.vmem %s115, 418 [#allocation4]
        %v242 = vld [vmem:[%s241] ss:$4 sm:$0xff]
        %s243 = scalar_lea.vmem %s115, 450 [#allocation4]
        %v244 = vld [vmem:[%s243] ss:$4 sm:$0xff]
        %s245 = scalar_lea.vmem %s115, 482 [#allocation4]
        %v246 = vld [vmem:[%s245] ss:$4 sm:$0xff]
        %s247 = scalar_lea.vmem %s115, 514 [#allocation4]
        %v248 = vld [vmem:[%s247] ss:$4 sm:$0xff]
        %s249 = scalar_lea.vmem %s115, 546 [#allocation4]
        %v250 = vld [vmem:[%s249] ss:$4 sm:$0xff]
        %s251 = scalar_lea.vmem %s115, 3 [#allocation4]
        %v252 = vld [vmem:[%s251] ss:$4 sm:$0xff]
        %s253 = scalar_lea.vmem %s115, 35 [#allocation4]
        %v254 = vld [vmem:[%s253] ss:$4 sm:$0xff]
        %s255 = scalar_lea.vmem %s115, 67 [#allocation4]
        %v256 = vld [vmem:[%s255] ss:$4 sm:$0xff]
        %s257 = scalar_lea.vmem %s115, 99 [#allocation4]
        %v258 = vld [vmem:[%s257] ss:$4 sm:$0xff]
        %s259 = scalar_lea.vmem %s115, 131 [#allocation4]
        %v260 = vld [vmem:[%s259] ss:$4 sm:$0xff]
        %s261 = scalar_lea.vmem %s115, 163 [#allocation4]
        %v262 = vld [vmem:[%s261] ss:$4 sm:$0xff]
        %s263 = scalar_lea.vmem %s115, 195 [#allocation4]
        %v264 = vld [vmem:[%s263] ss:$4 sm:$0xff]
        %s265 = scalar_lea.vmem %s115, 227 [#allocation4]
        %v266 = vld [vmem:[%s265] ss:$4 sm:$0xff]
        %s267 = scalar_lea.vmem %s115, 259 [#allocation4]
        %v268 = vld [vmem:[%s267] ss:$4 sm:$0xff]
        %s269 = scalar_lea.vmem %s115, 291 [#allocation4]
        %v270 = vld [vmem:[%s269] ss:$4 sm:$0xff]
        %s271 = scalar_lea.vmem %s115, 323 [#allocation4]
        %v272 = vld [vmem:[%s271] ss:$4 sm:$0xff]
        %s273 = scalar_lea.vmem %s115, 355 [#allocation4]
        %v274 = vld [vmem:[%s273] ss:$4 sm:$0xff]
        %s275 = scalar_lea.vmem %s115, 387 [#allocation4]
        %v276 = vld [vmem:[%s275] ss:$4 sm:$0xff]
        %s277 = scalar_lea.vmem %s115, 419 [#allocation4]
        %v278 = vld [vmem:[%s277] ss:$4 sm:$0xff]
        %s279 = scalar_lea.vmem %s115, 451 [#allocation4]
        %v280 = vld [vmem:[%s279] ss:$4 sm:$0xff]
        %s281 = scalar_lea.vmem %s115, 483 [#allocation4]
        %v282 = vld [vmem:[%s281] ss:$4 sm:$0xff]
        %s283 = scalar_lea.vmem %s115, 515 [#allocation4]
        %v284 = vld [vmem:[%s283] ss:$4 sm:$0xff]
        %s285 = scalar_lea.vmem %s115, 547 [#allocation4]
        %v286 = vld [vmem:[%s285] ss:$4 sm:$0xff]
        %v287 = vmax.f32 %v216, %v252
        %v288 = vmax.f32 %v218, %v254
        %v289 = vmax.f32 %v220, %v256
        %v290 = vmax.f32 %v222, %v258
        %v291 = vmax.f32 %v224, %v260
        %v292 = vmax.f32 %v226, %v262
        %v293 = vmax.f32 %v228, %v264
        %v294 = vmax.f32 %v230, %v266
        %v295 = vmax.f32 %v232, %v268
        %v296 = vmax.f32 %v234, %v270
        %v297 = vmax.f32 %v236, %v272
        %v298 = vmax.f32 %v238, %v274
        %v299 = vmax.f32 %v240, %v276
        %v300 = vmax.f32 %v242, %v278
        %v301 = vmax.f32 %v244, %v280
        %v302 = vmax.f32 %v246, %v282
        %v303 = vmax.f32 %v248, %v284
        %v304 = vmax.f32 %v250, %v286
        %v305 = vmax.f32 %v144, %v180
        %v306 = vmax.f32 %v146, %v182
        %v307 = vmax.f32 %v148, %v184
        %v308 = vmax.f32 %v150, %v186
        %v309 = vmax.f32 %v152, %v188
        %v310 = vmax.f32 %v154, %v190
        %v311 = vmax.f32 %v156, %v192
        %v312 = vmax.f32 %v158, %v194
        %v313 = vmax.f32 %v160, %v196
        %v314 = vmax.f32 %v162, %v198
        %v315 = vmax.f32 %v164, %v200
        %v316 = vmax.f32 %v166, %v202
        %v317 = vmax.f32 %v168, %v204
        %v318 = vmax.f32 %v170, %v206
        %v319 = vmax.f32 %v172, %v208
        %v320 = vmax.f32 %v174, %v210
        %v321 = vmax.f32 %v176, %v212
        %v322 = vmax.f32 %v178, %v214
        %v323 = vmax.f32 %v305, %v287
        %v324 = vmax.f32 %v306, %v288
        %v325 = vmax.f32 %v307, %v289
        %v326 = vmax.f32 %v308, %v290
        %v327 = vmax.f32 %v309, %v291
        %v328 = vmax.f32 %v310, %v292
        %v329 = vmax.f32 %v311, %v293
        %v330 = vmax.f32 %v312, %v294
        %v331 = vmax.f32 %v313, %v295
        %v332 = vmax.f32 %v314, %v296
        %v333 = vmax.f32 %v315, %v297
        %v334 = vmax.f32 %v316, %v298
        %v335 = vmax.f32 %v317, %v299
        %v336 = vmax.f32 %v318, %v300
        %v337 = vmax.f32 %v319, %v301
        %v338 = vmax.f32 %v320, %v302
        %v339 = vmax.f32 %v321, %v303
        %v340 = vmax.f32 %v322, %v304
        %vm359 = vcmask 1046528
        %v360 = vrot.slane %v323, 1
        %v361 = vrot.slane %v324, 1
        %v362 = vsel %vm359, %v360, %v361
        %v363 = vrot.slane %v325, 1
        %v364 = vrot.slane %v326, 1
        %v365 = vsel %vm359, %v363, %v364
        %v366 = vrot.slane %v327, 1
        %v367 = vrot.slane %v328, 1
        %v368 = vsel %vm359, %v366, %v367
        %v369 = vrot.slane %v329, 1
        %v370 = vrot.slane %v330, 1
        %v371 = vsel %vm359, %v369, %v370
        %v372 = vrot.slane %v331, 1
        %v373 = vrot.slane %v332, 1
        %v374 = vsel %vm359, %v372, %v373
        %v375 = vrot.slane %v333, 1
        %v376 = vrot.slane %v334, 1
        %v377 = vsel %vm359, %v375, %v376
        %v378 = vrot.slane %v335, 1
        %v379 = vrot.slane %v336, 1
        %v380 = vsel %vm359, %v378, %v379
        %v381 = vrot.slane %v337, 1
        %v382 = vrot.slane %v338, 1
        %v383 = vsel %vm359, %v381, %v382
        %v384 = vrot.slane %v339, 1
        %v385 = vrot.slane %v340, 1
        %v386 = vsel %vm359, %v384, %v385
        %v405 = vmax.f32 %v323, %v362
        %v406 = vmax.f32 %v324, %v361
        %v407 = vmax.f32 %v325, %v365
        %v408 = vmax.f32 %v326, %v364
        %v409 = vmax.f32 %v327, %v368
        %v410 = vmax.f32 %v328, %v367
        %v411 = vmax.f32 %v329, %v371
        %v412 = vmax.f32 %v330, %v370
        %v413 = vmax.f32 %v331, %v374
        %v414 = vmax.f32 %v332, %v373
        %v415 = vmax.f32 %v333, %v377
        %v416 = vmax.f32 %v334, %v376
        %v417 = vmax.f32 %v335, %v380
        %v418 = vmax.f32 %v336, %v379
        %v419 = vmax.f32 %v337, %v383
        %v420 = vmax.f32 %v338, %v382
        %v421 = vmax.f32 %v339, %v386
        %v422 = vmax.f32 %v340, %v385
        %vm423 = vcmask 785408
        %424 = vst.msk [vmem:[#allocation2] sm:$0xff] %vm423, %v405
        %vm425 = vcmask 784384
        %426 = vst.msk [vmem:[#allocation2 + $0x8] sm:$0x7f] %vm425, %v406
        %427 = vst.msk [vmem:[#allocation2 + $0x10] sm:$0xff] %vm423, %v407
        %428 = vst.msk [vmem:[#allocation2 + $0x18] sm:$0x7f] %vm425, %v408
        %429 = vst.msk [vmem:[#allocation2 + $0x20] sm:$0xff] %vm423, %v409
        %430 = vst.msk [vmem:[#allocation2 + $0x28] sm:$0x7f] %vm425, %v410
        %431 = vst.msk [vmem:[#allocation2 + $0x30] sm:$0xff] %vm423, %v411
        %432 = vst.msk [vmem:[#allocation2 + $0x38] sm:$0x7f] %vm425, %v412
        %433 = vst.msk [vmem:[#allocation2 + $0x40] sm:$0xff] %vm423, %v413
        %434 = vst.msk [vmem:[#allocation2 + $0x48] sm:$0x7f] %vm425, %v414
        %435 = vst.msk [vmem:[#allocation2 + $0x50] sm:$0xff] %vm423, %v415
        %436 = vst.msk [vmem:[#allocation2 + $0x58] sm:$0x7f] %vm425, %v416
        %437 = vst.msk [vmem:[#allocation2 + $0x60] sm:$0xff] %vm423, %v417
        %438 = vst.msk [vmem:[#allocation2 + $0x68] sm:$0x7f] %vm425, %v418
        %439 = vst.msk [vmem:[#allocation2 + $0x70] sm:$0xff] %vm423, %v419
        %440 = vst.msk [vmem:[#allocation2 + $0x78] sm:$0x7f] %vm425, %v420
        %441 = vst.msk [vmem:[#allocation2 + $0x80] sm:$0xff] %vm423, %v421
        %442 = vst.msk [vmem:[#allocation2 + $0x88] sm:$0x7f] %vm425, %v422
        %v443 = vld [vmem:[#allocation2 + $0x1] sm:$0xff]
        %v444 = vld [vmem:[#allocation2 + $0x9] sm:$0x3f]
        %v445 = vld [vmem:[#allocation2 + $0x11] sm:$0xff]
        %v446 = vld [vmem:[#allocation2 + $0x19] sm:$0x3f]
        %v447 = vld [vmem:[#allocation2 + $0x21] sm:$0xff]
        %v448 = vld [vmem:[#allocation2 + $0x29] sm:$0x3f]
        %v449 = vld [vmem:[#allocation2 + $0x31] sm:$0xff]
        %v450 = vld [vmem:[#allocation2 + $0x39] sm:$0x3f]
        %v451 = vld [vmem:[#allocation2 + $0x41] sm:$0xff]
        %v452 = vld [vmem:[#allocation2 + $0x49] sm:$0x3f]
        %v453 = vld [vmem:[#allocation2 + $0x51] sm:$0xff]
        %v454 = vld [vmem:[#allocation2 + $0x59] sm:$0x3f]
        %v455 = vld [vmem:[#allocation2 + $0x61] sm:$0xff]
        %v456 = vld [vmem:[#allocation2 + $0x69] sm:$0x3f]
        %v457 = vld [vmem:[#allocation2 + $0x71] sm:$0xff]
        %v458 = vld [vmem:[#allocation2 + $0x79] sm:$0x3f]
        %v459 = vld [vmem:[#allocation2 + $0x81] sm:$0xff]
        %v460 = vld [vmem:[#allocation2 + $0x89] sm:$0x3f]
        %v461 = vmax.f32 %v443, %v287
        %v462 = vmax.f32 %v444, %v288
        %v463 = vmax.f32 %v445, %v289
        %v464 = vmax.f32 %v446, %v290
        %v465 = vmax.f32 %v447, %v291
        %v466 = vmax.f32 %v448, %v292
        %v467 = vmax.f32 %v449, %v293
        %v468 = vmax.f32 %v450, %v294
        %v469 = vmax.f32 %v451, %v295
        %v470 = vmax.f32 %v452, %v296
        %v471 = vmax.f32 %v453, %v297
        %v472 = vmax.f32 %v454, %v298
        %v473 = vmax.f32 %v455, %v299
        %v474 = vmax.f32 %v456, %v300
        %v475 = vmax.f32 %v457, %v301
        %v476 = vmax.f32 %v458, %v302
        %v477 = vmax.f32 %v459, %v303
        %v478 = vmax.f32 %v460, %v304
        %479 = vst.msk [vmem:[#allocation2 + $0x1] sm:$0xff] %vm423, %v461
        %vm480 = vcmask 783360
        %481 = vst.msk [vmem:[#allocation2 + $0x9] sm:$0x3f] %vm480, %v462
        %482 = vst.msk [vmem:[#allocation2 + $0x11] sm:$0xff] %vm423, %v463
        %483 = vst.msk [vmem:[#allocation2 + $0x19] sm:$0x3f] %vm480, %v464
        %484 = vst.msk [vmem:[#allocation2 + $0x21] sm:$0xff] %vm423, %v465
        %485 = vst.msk [vmem:[#allocation2 + $0x29] sm:$0x3f] %vm480, %v466
        %486 = vst.msk [vmem:[#allocation2 + $0x31] sm:$0xff] %vm423, %v467
        %487 = vst.msk [vmem:[#allocation2 + $0x39] sm:$0x3f] %vm480, %v468
        %488 = vst.msk [vmem:[#allocation2 + $0x41] sm:$0xff] %vm423, %v469
        %489 = vst.msk [vmem:[#allocation2 + $0x49] sm:$0x3f] %vm480, %v470
        %490 = vst.msk [vmem:[#allocation2 + $0x51] sm:$0xff] %vm423, %v471
        %491 = vst.msk [vmem:[#allocation2 + $0x59] sm:$0x3f] %vm480, %v472
        %492 = vst.msk [vmem:[#allocation2 + $0x61] sm:$0xff] %vm423, %v473
        %493 = vst.msk [vmem:[#allocation2 + $0x69] sm:$0x3f] %vm480, %v474
        %494 = vst.msk [vmem:[#allocation2 + $0x71] sm:$0xff] %vm423, %v475
        %495 = vst.msk [vmem:[#allocation2 + $0x79] sm:$0x3f] %vm480, %v476
        %496 = vst.msk [vmem:[#allocation2 + $0x81] sm:$0xff] %vm423, %v477
        %497 = vst.msk [vmem:[#allocation2 + $0x89] sm:$0x3f] %vm480, %v478
        %v498 = vld [vmem:[#allocation2] sm:$0xff]
        %v499 = vld [vmem:[#allocation2 + $0x8] sm:$0x3f]
        %v500 = vld [vmem:[#allocation2 + $0x10] sm:$0xff]
        %v501 = vld [vmem:[#allocation2 + $0x18] sm:$0x3f]
        %v502 = vld [vmem:[#allocation2 + $0x20] sm:$0xff]
        %v503 = vld [vmem:[#allocation2 + $0x28] sm:$0x3f]
        %v504 = vld [vmem:[#allocation2 + $0x30] sm:$0xff]
        %v505 = vld [vmem:[#allocation2 + $0x38] sm:$0x3f]
        %v506 = vld [vmem:[#allocation2 + $0x40] sm:$0xff]
        %v507 = vld [vmem:[#allocation2 + $0x48] sm:$0x3f]
        %v508 = vld [vmem:[#allocation2 + $0x50] sm:$0xff]
        %v509 = vld [vmem:[#allocation2 + $0x58] sm:$0x3f]
        %v510 = vld [vmem:[#allocation2 + $0x60] sm:$0xff]
        %v511 = vld [vmem:[#allocation2 + $0x68] sm:$0x3f]
        %v512 = vld [vmem:[#allocation2 + $0x70] sm:$0xff]
        %v513 = vld [vmem:[#allocation2 + $0x78] sm:$0x3f]
        %v514 = vld [vmem:[#allocation2 + $0x80] sm:$0xff]
        %v515 = vld [vmem:[#allocation2 + $0x88] sm:$0x3f]
        %vm534 = vcmask 1045504
        %v535 = vrot.slane %v144, 2
        %v536 = vrot.slane %v146, 2
        %v537 = vsel %vm534, %v535, %v536
        %v538 = vrot.slane %v148, 2
        %v539 = vrot.slane %v150, 2
        %v540 = vsel %vm534, %v538, %v539
        %v541 = vrot.slane %v152, 2
        %v542 = vrot.slane %v154, 2
        %v543 = vsel %vm534, %v541, %v542
        %v544 = vrot.slane %v156, 2
        %v545 = vrot.slane %v158, 2
        %v546 = vsel %vm534, %v544, %v545
        %v547 = vrot.slane %v160, 2
        %v548 = vrot.slane %v162, 2
        %v549 = vsel %vm534, %v547, %v548
        %v550 = vrot.slane %v164, 2
        %v551 = vrot.slane %v166, 2
        %v552 = vsel %vm534, %v550, %v551
        %v553 = vrot.slane %v168, 2
        %v554 = vrot.slane %v170, 2
        %v555 = vsel %vm534, %v553, %v554
        %v556 = vrot.slane %v172, 2
        %v557 = vrot.slane %v174, 2
        %v558 = vsel %vm534, %v556, %v557
        %v559 = vrot.slane %v176, 2
        %v560 = vrot.slane %v178, 2
        %v561 = vsel %vm534, %v559, %v560
        %v580 = vmax.f32 %v498, %v537
        %v581 = vmax.f32 %v499, %v536
        %v582 = vmax.f32 %v500, %v540
        %v583 = vmax.f32 %v501, %v539
        %v584 = vmax.f32 %v502, %v543
        %v585 = vmax.f32 %v503, %v542
        %v586 = vmax.f32 %v504, %v546
        %v587 = vmax.f32 %v505, %v545
        %v588 = vmax.f32 %v506, %v549
        %v589 = vmax.f32 %v507, %v548
        %v590 = vmax.f32 %v508, %v552
        %v591 = vmax.f32 %v509, %v551
        %v592 = vmax.f32 %v510, %v555
        %v593 = vmax.f32 %v511, %v554
        %v594 = vmax.f32 %v512, %v558
        %v595 = vmax.f32 %v513, %v557
        %v596 = vmax.f32 %v514, %v561
        %v597 = vmax.f32 %v515, %v560
        %598 = vst.msk [vmem:[#allocation2] sm:$0xff] %vm423, %v580
        %599 = vst.msk [vmem:[#allocation2 + $0x8] sm:$0x3f] %vm480, %v581
        %600 = vst.msk [vmem:[#allocation2 + $0x10] sm:$0xff] %vm423, %v582
        %601 = vst.msk [vmem:[#allocation2 + $0x18] sm:$0x3f] %vm480, %v583
        %602 = vst.msk [vmem:[#allocation2 + $0x20] sm:$0xff] %vm423, %v584
        %603 = vst.msk [vmem:[#allocation2 + $0x28] sm:$0x3f] %vm480, %v585
        %604 = vst.msk [vmem:[#allocation2 + $0x30] sm:$0xff] %vm423, %v586
        %605 = vst.msk [vmem:[#allocation2 + $0x38] sm:$0x3f] %vm480, %v587
        %606 = vst.msk [vmem:[#allocation2 + $0x40] sm:$0xff] %vm423, %v588
        %607 = vst.msk [vmem:[#allocation2 + $0x48] sm:$0x3f] %vm480, %v589
        %608 = vst.msk [vmem:[#allocation2 + $0x50] sm:$0xff] %vm423, %v590
        %609 = vst.msk [vmem:[#allocation2 + $0x58] sm:$0x3f] %vm480, %v591
        %610 = vst.msk [vmem:[#allocation2 + $0x60] sm:$0xff] %vm423, %v592
        %611 = vst.msk [vmem:[#allocation2 + $0x68] sm:$0x3f] %vm480, %v593
        %612 = vst.msk [vmem:[#allocation2 + $0x70] sm:$0xff] %vm423, %v594
        %613 = vst.msk [vmem:[#allocation2 + $0x78] sm:$0x3f] %vm480, %v595
        %614 = vst.msk [vmem:[#allocation2 + $0x80] sm:$0xff] %vm423, %v596
        %615 = vst.msk [vmem:[#allocation2 + $0x88] sm:$0x3f] %vm480, %v597
        %v616 = vld [vmem:[#allocation2] sm:$0xff]
        %v617 = vld [vmem:[#allocation2 + $0x8] sm:$0x7f]
        %618 = vxpose.xlu0.b32.start [1/16] %v616, 128
        %619 = vxpose.xlu0.b32.cont [2/16] %v617, 128
        %620 = vxpose.xlu0.b32.cont [3/16] 0.0, 128
        %621 = vxpose.xlu0.b32.cont [4/16] 0.0, 128
        %622 = vxpose.xlu0.b32.cont [5/16] 0.0, 128
        %623 = vxpose.xlu0.b32.cont [6/16] 0.0, 128
        %624 = vxpose.xlu0.b32.cont [7/16] 0.0, 128
        %625 = vxpose.xlu0.b32.cont [8/16] 0.0, 128
        %626 = vxpose.xlu0.b32.cont [9/16] 0.0, 128
        %627 = vxpose.xlu0.b32.cont [10/16] 0.0, 128
        %628 = vxpose.xlu0.b32.cont [11/16] 0.0, 128
        %629 = vxpose.xlu0.b32.cont [12/16] 0.0, 128
        %630 = vxpose.xlu0.b32.cont [13/16] 0.0, 128
        %631 = vxpose.xlu0.b32.cont [14/16] 0.0, 128
        %632 = vxpose.xlu0.b32.cont [15/16] 0.0, 128
        %633 = vxpose.xlu0.b32.end [16/16] 0.0, 128
        %v634 = vpop.trf.xlu0
        %v635 = vpop.trf.xlu0
        %v636 = vpop.trf.xlu0
        %v637 = vpop.trf.xlu0
        %v638 = vpop.trf.xlu0
        %v639 = vpop.trf.xlu0
        %v640 = vpop.trf.xlu0
        %v641 = vpop.trf.xlu0
        %v642 = vpop.trf.xlu0
        %v643 = vpop.trf.xlu0
        %v644 = vpop.trf.xlu0
        %v645 = vpop.trf.xlu0
        %v646 = vpop.trf.xlu0
        %v647 = vpop.trf.xlu0
        %v648 = vpop.trf.xlu0
        %v649 = vpop.trf.xlu0
        %vm650 = vcmask 121856
        %651 = vst.msk [vmem:[#allocation3] sm:$0xff] %vm650, %v634
        %652 = vst.msk [vmem:[#allocation3 + $0x8] sm:$0xff] %vm650, %v635
        %653 = vst.msk [vmem:[#allocation3 + $0x10] sm:$0xff] %vm650, %v636
        %654 = vst.msk [vmem:[#allocation3 + $0x18] sm:$0xff] %vm650, %v637
        %655 = vst.msk [vmem:[#allocation3 + $0x20] sm:$0xff] %vm650, %v638
        %656 = vst.msk [vmem:[#allocation3 + $0x28] sm:$0xff] %vm650, %v639
        %657 = vst.msk [vmem:[#allocation3 + $0x30] sm:$0xff] %vm650, %v640
        %658 = vst.msk [vmem:[#allocation3 + $0x38] sm:$0xff] %vm650, %v641
        %659 = vst.msk [vmem:[#allocation3 + $0x40] sm:$0xff] %vm650, %v642
        %660 = vst.msk [vmem:[#allocation3 + $0x48] sm:$0xff] %vm650, %v643
        %661 = vst.msk [vmem:[#allocation3 + $0x50] sm:$0xff] %vm650, %v644
        %662 = vst.msk [vmem:[#allocation3 + $0x58] sm:$0xff] %vm650, %v645
        %s663 = scalar_lea.vmem [#allocation2], 16
        %v664 = vld [vmem:[%s663] sm:$0xff]
        %v665 = vld [vmem:[%s663 + $0x8] sm:$0x7f]
        %666 = vxpose.xlu0.b32.start [1/16] %v664, 128
        %667 = vxpose.xlu0.b32.cont [2/16] %v665, 128
        %668 = vxpose.xlu0.b32.cont [3/16] 0.0, 128
        %669 = vxpose.xlu0.b32.cont [4/16] 0.0, 128
        %670 = vxpose.xlu0.b32.cont [5/16] 0.0, 128
        %671 = vxpose.xlu0.b32.cont [6/16] 0.0, 128
        %672 = vxpose.xlu0.b32.cont [7/16] 0.0, 128
        %673 = vxpose.xlu0.b32.cont [8/16] 0.0, 128
        %674 = vxpose.xlu0.b32.cont [9/16] 0.0, 128
        %675 = vxpose.xlu0.b32.cont [10/16] 0.0, 128
        %676 = vxpose.xlu0.b32.cont [11/16] 0.0, 128
        %677 = vxpose.xlu0.b32.cont [12/16] 0.0, 128
        %678 = vxpose.xlu0.b32.cont [13/16] 0.0, 128
        %679 = vxpose.xlu0.b32.cont [14/16] 0.0, 128
        %680 = vxpose.xlu0.b32.cont [15/16] 0.0, 128
        %681 = vxpose.xlu0.b32.end [16/16] 0.0, 128
        %v682 = vpop.trf.xlu0
        %v683 = vpop.trf.xlu0
        %v684 = vpop.trf.xlu0
        %v685 = vpop.trf.xlu0
        %v686 = vpop.trf.xlu0
        %v687 = vpop.trf.xlu0
        %v688 = vpop.trf.xlu0
        %v689 = vpop.trf.xlu0
        %v690 = vpop.trf.xlu0
        %v691 = vpop.trf.xlu0
        %v692 = vpop.trf.xlu0
        %v693 = vpop.trf.xlu0
        %v694 = vpop.trf.xlu0
        %v695 = vpop.trf.xlu0
        %v696 = vpop.trf.xlu0
        %v697 = vpop.trf.xlu0
        %s698 = scalar_lea.vmem [#allocation3], 96
        %699 = vst.msk [vmem:[%s698] sm:$0xff] %vm650, %v682
        %700 = vst.msk [vmem:[%s698 + $0x8] sm:$0xff] %vm650, %v683
        %701 = vst.msk [vmem:[%s698 + $0x10] sm:$0xff] %vm650, %v684
        %702 = vst.msk [vmem:[%s698 + $0x18] sm:$0xff] %vm650, %v685
        %703 = vst.msk [vmem:[%s698 + $0x20] sm:$0xff] %vm650, %v686
        %704 = vst.msk [vmem:[%s698 + $0x28] sm:$0xff] %vm650, %v687
        %705 = vst.msk [vmem:[%s698 + $0x30] sm:$0xff] %vm650, %v688
        %706 = vst.msk [vmem:[%s698 + $0x38] sm:$0xff] %vm650, %v689
        %707 = vst.msk [vmem:[%s698 + $0x40] sm:$0xff] %vm650, %v690
        %708 = vst.msk [vmem:[%s698 + $0x48] sm:$0xff] %vm650, %v691
        %709 = vst.msk [vmem:[%s698 + $0x50] sm:$0xff] %vm650, %v692
        %710 = vst.msk [vmem:[%s698 + $0x58] sm:$0xff] %vm650, %v693
        %s711 = scalar_lea.vmem [#allocation2], 32
        %v712 = vld [vmem:[%s711] sm:$0xff]
        %v713 = vld [vmem:[%s711 + $0x8] sm:$0x7f]
        %714 = vxpose.xlu0.b32.start [1/16] %v712, 128
        %715 = vxpose.xlu0.b32.cont [2/16] %v713, 128
        %716 = vxpose.xlu0.b32.cont [3/16] 0.0, 128
        %717 = vxpose.xlu0.b32.cont [4/16] 0.0, 128
        %718 = vxpose.xlu0.b32.cont [5/16] 0.0, 128
        %719 = vxpose.xlu0.b32.cont [6/16] 0.0, 128
        %720 = vxpose.xlu0.b32.cont [7/16] 0.0, 128
        %721 = vxpose.xlu0.b32.cont [8/16] 0.0, 128
        %722 = vxpose.xlu0.b32.cont [9/16] 0.0, 128
        %723 = vxpose.xlu0.b32.cont [10/16] 0.0, 128
        %724 = vxpose.xlu0.b32.cont [11/16] 0.0, 128
        %725 = vxpose.xlu0.b32.cont [12/16] 0.0, 128
        %726 = vxpose.xlu0.b32.cont [13/16] 0.0, 128
        %727 = vxpose.xlu0.b32.cont [14/16] 0.0, 128
        %728 = vxpose.xlu0.b32.cont [15/16] 0.0, 128
        %729 = vxpose.xlu0.b32.end [16/16] 0.0, 128
        %v730 = vpop.trf.xlu0
        %v731 = vpop.trf.xlu0
        %v732 = vpop.trf.xlu0
        %v733 = vpop.trf.xlu0
        %v734 = vpop.trf.xlu0
        %v735 = vpop.trf.xlu0
        %v736 = vpop.trf.xlu0
        %v737 = vpop.trf.xlu0
        %v738 = vpop.trf.xlu0
        %v739 = vpop.trf.xlu0
        %v740 = vpop.trf.xlu0
        %v741 = vpop.trf.xlu0
        %v742 = vpop.trf.xlu0
        %v743 = vpop.trf.xlu0
        %v744 = vpop.trf.xlu0
        %v745 = vpop.trf.xlu0
        %s746 = scalar_lea.vmem [#allocation3], 192
        %747 = vst.msk [vmem:[%s746] sm:$0xff] %vm650, %v730
        %748 = vst.msk [vmem:[%s746 + $0x8] sm:$0xff] %vm650, %v731
        %749 = vst.msk [vmem:[%s746 + $0x10] sm:$0xff] %vm650, %v732
        %750 = vst.msk [vmem:[%s746 + $0x18] sm:$0xff] %vm650, %v733
        %751 = vst.msk [vmem:[%s746 + $0x20] sm:$0xff] %vm650, %v734
        %752 = vst.msk [vmem:[%s746 + $0x28] sm:$0xff] %vm650, %v735
        %753 = vst.msk [vmem:[%s746 + $0x30] sm:$0xff] %vm650, %v736
        %754 = vst.msk [vmem:[%s746 + $0x38] sm:$0xff] %vm650, %v737
        %755 = vst.msk [vmem:[%s746 + $0x40] sm:$0xff] %vm650, %v738
        %756 = vst.msk [vmem:[%s746 + $0x48] sm:$0xff] %vm650, %v739
        %757 = vst.msk [vmem:[%s746 + $0x50] sm:$0xff] %vm650, %v740
        %758 = vst.msk [vmem:[%s746 + $0x58] sm:$0xff] %vm650, %v741
        %s759 = scalar_lea.vmem [#allocation2], 48
        %v760 = vld [vmem:[%s759] sm:$0xff]
        %v761 = vld [vmem:[%s759 + $0x8] sm:$0x7f]
        %762 = vxpose.xlu0.b32.start [1/16] %v760, 128
        %763 = vxpose.xlu0.b32.cont [2/16] %v761, 128
        %764 = vxpose.xlu0.b32.cont [3/16] 0.0, 128
        %765 = vxpose.xlu0.b32.cont [4/16] 0.0, 128
        %766 = vxpose.xlu0.b32.cont [5/16] 0.0, 128
        %767 = vxpose.xlu0.b32.cont [6/16] 0.0, 128
        %768 = vxpose.xlu0.b32.cont [7/16] 0.0, 128
        %769 = vxpose.xlu0.b32.cont [8/16] 0.0, 128
        %770 = vxpose.xlu0.b32.cont [9/16] 0.0, 128
        %771 = vxpose.xlu0.b32.cont [10/16] 0.0, 128
        %772 = vxpose.xlu0.b32.cont [11/16] 0.0, 128
        %773 = vxpose.xlu0.b32.cont [12/16] 0.0, 128
        %774 = vxpose.xlu0.b32.cont [13/16] 0.0, 128
        %775 = vxpose.xlu0.b32.cont [14/16] 0.0, 128
        %776 = vxpose.xlu0.b32.cont [15/16] 0.0, 128
        %777 = vxpose.xlu0.b32.end [16/16] 0.0, 128
        %v778 = vpop.trf.xlu0
        %v779 = vpop.trf.xlu0
        %v780 = vpop.trf.xlu0
        %v781 = vpop.trf.xlu0
        %v782 = vpop.trf.xlu0
        %v783 = vpop.trf.xlu0
        %v784 = vpop.trf.xlu0
        %v785 = vpop.trf.xlu0
        %v786 = vpop.trf.xlu0
        %v787 = vpop.trf.xlu0
        %v788 = vpop.trf.xlu0
        %v789 = vpop.trf.xlu0
        %v790 = vpop.trf.xlu0
        %v791 = vpop.trf.xlu0
        %v792 = vpop.trf.xlu0
        %v793 = vpop.trf.xlu0
        %s794 = scalar_lea.vmem [#allocation3], 288
        %795 = vst.msk [vmem:[%s794] sm:$0xff] %vm650, %v778
        %796 = vst.msk [vmem:[%s794 + $0x8] sm:$0xff] %vm650, %v779
        %797 = vst.msk [vmem:[%s794 + $0x10] sm:$0xff] %vm650, %v780
        %798 = vst.msk [vmem:[%s794 + $0x18] sm:$0xff] %vm650, %v781
        %799 = vst.msk [vmem:[%s794 + $0x20] sm:$0xff] %vm650, %v782
        %800 = vst.msk [vmem:[%s794 + $0x28] sm:$0xff] %vm650, %v783
        %801 = vst.msk [vmem:[%s794 + $0x30] sm:$0xff] %vm650, %v784
        %802 = vst.msk [vmem:[%s794 + $0x38] sm:$0xff] %vm650, %v785
        %803 = vst.msk [vmem:[%s794 + $0x40] sm:$0xff] %vm650, %v786
        %804 = vst.msk [vmem:[%s794 + $0x48] sm:$0xff] %vm650, %v787
        %805 = vst.msk [vmem:[%s794 + $0x50] sm:$0xff] %vm650, %v788
        %806 = vst.msk [vmem:[%s794 + $0x58] sm:$0xff] %vm650, %v789
        %s807 = scalar_lea.vmem [#allocation2], 64
        %v808 = vld [vmem:[%s807] sm:$0xff]
        %v809 = vld [vmem:[%s807 + $0x8] sm:$0x7f]
        %810 = vxpose.xlu0.b32.start [1/16] %v808, 128
        %811 = vxpose.xlu0.b32.cont [2/16] %v809, 128
        %812 = vxpose.xlu0.b32.cont [3/16] 0.0, 128
        %813 = vxpose.xlu0.b32.cont [4/16] 0.0, 128
        %814 = vxpose.xlu0.b32.cont [5/16] 0.0, 128
        %815 = vxpose.xlu0.b32.cont [6/16] 0.0, 128
        %816 = vxpose.xlu0.b32.cont [7/16] 0.0, 128
        %817 = vxpose.xlu0.b32.cont [8/16] 0.0, 128
        %818 = vxpose.xlu0.b32.cont [9/16] 0.0, 128
        %819 = vxpose.xlu0.b32.cont [10/16] 0.0, 128
        %820 = vxpose.xlu0.b32.cont [11/16] 0.0, 128
        %821 = vxpose.xlu0.b32.cont [12/16] 0.0, 128
        %822 = vxpose.xlu0.b32.cont [13/16] 0.0, 128
        %823 = vxpose.xlu0.b32.cont [14/16] 0.0, 128
        %824 = vxpose.xlu0.b32.cont [15/16] 0.0, 128
        %825 = vxpose.xlu0.b32.end [16/16] 0.0, 128
        %v826 = vpop.trf.xlu0
        %v827 = vpop.trf.xlu0
        %v828 = vpop.trf.xlu0
        %v829 = vpop.trf.xlu0
        %v830 = vpop.trf.xlu0
        %v831 = vpop.trf.xlu0
        %v832 = vpop.trf.xlu0
        %v833 = vpop.trf.xlu0
        %v834 = vpop.trf.xlu0
        %v835 = vpop.trf.xlu0
        %v836 = vpop.trf.xlu0
        %v837 = vpop.trf.xlu0
        %v838 = vpop.trf.xlu0
        %v839 = vpop.trf.xlu0
        %v840 = vpop.trf.xlu0
        %v841 = vpop.trf.xlu0
        %s842 = scalar_lea.vmem [#allocation3], 384
        %843 = vst.msk [vmem:[%s842] sm:$0xff] %vm650, %v826
        %844 = vst.msk [vmem:[%s842 + $0x8] sm:$0xff] %vm650, %v827
        %845 = vst.msk [vmem:[%s842 + $0x10] sm:$0xff] %vm650, %v828
        %846 = vst.msk [vmem:[%s842 + $0x18] sm:$0xff] %vm650, %v829
        %847 = vst.msk [vmem:[%s842 + $0x20] sm:$0xff] %vm650, %v830
        %848 = vst.msk [vmem:[%s842 + $0x28] sm:$0xff] %vm650, %v831
        %849 = vst.msk [vmem:[%s842 + $0x30] sm:$0xff] %vm650, %v832
        %850 = vst.msk [vmem:[%s842 + $0x38] sm:$0xff] %vm650, %v833
        %851 = vst.msk [vmem:[%s842 + $0x40] sm:$0xff] %vm650, %v834
        %852 = vst.msk [vmem:[%s842 + $0x48] sm:$0xff] %vm650, %v835
        %853 = vst.msk [vmem:[%s842 + $0x50] sm:$0xff] %vm650, %v836
        %854 = vst.msk [vmem:[%s842 + $0x58] sm:$0xff] %vm650, %v837
        %s855 = scalar_lea.vmem [#allocation2], 80
        %v856 = vld [vmem:[%s855] sm:$0xff]
        %v857 = vld [vmem:[%s855 + $0x8] sm:$0x7f]
        %858 = vxpose.xlu0.b32.start [1/16] %v856, 128
        %859 = vxpose.xlu0.b32.cont [2/16] %v857, 128
        %860 = vxpose.xlu0.b32.cont [3/16] 0.0, 128
        %861 = vxpose.xlu0.b32.cont [4/16] 0.0, 128
        %862 = vxpose.xlu0.b32.cont [5/16] 0.0, 128
        %863 = vxpose.xlu0.b32.cont [6/16] 0.0, 128
        %864 = vxpose.xlu0.b32.cont [7/16] 0.0, 128
        %865 = vxpose.xlu0.b32.cont [8/16] 0.0, 128
        %866 = vxpose.xlu0.b32.cont [9/16] 0.0, 128
        %867 = vxpose.xlu0.b32.cont [10/16] 0.0, 128
        %868 = vxpose.xlu0.b32.cont [11/16] 0.0, 128
        %869 = vxpose.xlu0.b32.cont [12/16] 0.0, 128
        %870 = vxpose.xlu0.b32.cont [13/16] 0.0, 128
        %871 = vxpose.xlu0.b32.cont [14/16] 0.0, 128
        %872 = vxpose.xlu0.b32.cont [15/16] 0.0, 128
        %873 = vxpose.xlu0.b32.end [16/16] 0.0, 128
        %v874 = vpop.trf.xlu0
        %v875 = vpop.trf.xlu0
        %v876 = vpop.trf.xlu0
        %v877 = vpop.trf.xlu0
        %v878 = vpop.trf.xlu0
        %v879 = vpop.trf.xlu0
        %v880 = vpop.trf.xlu0
        %v881 = vpop.trf.xlu0
        %v882 = vpop.trf.xlu0
        %v883 = vpop.trf.xlu0
        %v884 = vpop.trf.xlu0
        %v885 = vpop.trf.xlu0
        %v886 = vpop.trf.xlu0
        %v887 = vpop.trf.xlu0
        %v888 = vpop.trf.xlu0
        %v889 = vpop.trf.xlu0
        %s890 = scalar_lea.vmem [#allocation3], 480
        %891 = vst.msk [vmem:[%s890] sm:$0xff] %vm650, %v874
        %892 = vst.msk [vmem:[%s890 + $0x8] sm:$0xff] %vm650, %v875
        %893 = vst.msk [vmem:[%s890 + $0x10] sm:$0xff] %vm650, %v876
        %894 = vst.msk [vmem:[%s890 + $0x18] sm:$0xff] %vm650, %v877
        %895 = vst.msk [vmem:[%s890 + $0x20] sm:$0xff] %vm650, %v878
        %896 = vst.msk [vmem:[%s890 + $0x28] sm:$0xff] %vm650, %v879
        %897 = vst.msk [vmem:[%s890 + $0x30] sm:$0xff] %vm650, %v880
        %898 = vst.msk [vmem:[%s890 + $0x38] sm:$0xff] %vm650, %v881
        %899 = vst.msk [vmem:[%s890 + $0x40] sm:$0xff] %vm650, %v882
        %900 = vst.msk [vmem:[%s890 + $0x48] sm:$0xff] %vm650, %v883
        %901 = vst.msk [vmem:[%s890 + $0x50] sm:$0xff] %vm650, %v884
        %902 = vst.msk [vmem:[%s890 + $0x58] sm:$0xff] %vm650, %v885
        %s903 = scalar_lea.vmem [#allocation2], 96
        %v904 = vld [vmem:[%s903] sm:$0xff]
        %v905 = vld [vmem:[%s903 + $0x8] sm:$0x7f]
        %906 = vxpose.xlu0.b32.start [1/16] %v904, 128
        %907 = vxpose.xlu0.b32.cont [2/16] %v905, 128
        %908 = vxpose.xlu0.b32.cont [3/16] 0.0, 128
        %909 = vxpose.xlu0.b32.cont [4/16] 0.0, 128
        %910 = vxpose.xlu0.b32.cont [5/16] 0.0, 128
        %911 = vxpose.xlu0.b32.cont [6/16] 0.0, 128
        %912 = vxpose.xlu0.b32.cont [7/16] 0.0, 128
        %913 = vxpose.xlu0.b32.cont [8/16] 0.0, 128
        %914 = vxpose.xlu0.b32.cont [9/16] 0.0, 128
        %915 = vxpose.xlu0.b32.cont [10/16] 0.0, 128
        %916 = vxpose.xlu0.b32.cont [11/16] 0.0, 128
        %917 = vxpose.xlu0.b32.cont [12/16] 0.0, 128
        %918 = vxpose.xlu0.b32.cont [13/16] 0.0, 128
        %919 = vxpose.xlu0.b32.cont [14/16] 0.0, 128
        %920 = vxpose.xlu0.b32.cont [15/16] 0.0, 128
        %921 = vxpose.xlu0.b32.end [16/16] 0.0, 128
        %v922 = vpop.trf.xlu0
        %v923 = vpop.trf.xlu0
        %v924 = vpop.trf.xlu0
        %v925 = vpop.trf.xlu0
        %v926 = vpop.trf.xlu0
        %v927 = vpop.trf.xlu0
        %v928 = vpop.trf.xlu0
        %v929 = vpop.trf.xlu0
        %v930 = vpop.trf.xlu0
        %v931 = vpop.trf.xlu0
        %v932 = vpop.trf.xlu0
        %v933 = vpop.trf.xlu0
        %v934 = vpop.trf.xlu0
        %v935 = vpop.trf.xlu0
        %v936 = vpop.trf.xlu0
        %v937 = vpop.trf.xlu0
        %s938 = scalar_lea.vmem [#allocation3], 576
        %939 = vst.msk [vmem:[%s938] sm:$0xff] %vm650, %v922
        %940 = vst.msk [vmem:[%s938 + $0x8] sm:$0xff] %vm650, %v923
        %941 = vst.msk [vmem:[%s938 + $0x10] sm:$0xff] %vm650, %v924
        %942 = vst.msk [vmem:[%s938 + $0x18] sm:$0xff] %vm650, %v925
        %943 = vst.msk [vmem:[%s938 + $0x20] sm:$0xff] %vm650, %v926
        %944 = vst.msk [vmem:[%s938 + $0x28] sm:$0xff] %vm650, %v927
        %945 = vst.msk [vmem:[%s938 + $0x30] sm:$0xff] %vm650, %v928
        %946 = vst.msk [vmem:[%s938 + $0x38] sm:$0xff] %vm650, %v929
        %947 = vst.msk [vmem:[%s938 + $0x40] sm:$0xff] %vm650, %v930
        %948 = vst.msk [vmem:[%s938 + $0x48] sm:$0xff] %vm650, %v931
        %949 = vst.msk [vmem:[%s938 + $0x50] sm:$0xff] %vm650, %v932
        %950 = vst.msk [vmem:[%s938 + $0x58] sm:$0xff] %vm650, %v933
        %s951 = scalar_lea.vmem [#allocation2], 112
        %v952 = vld [vmem:[%s951] sm:$0xff]
        %v953 = vld [vmem:[%s951 + $0x8] sm:$0x7f]
        %954 = vxpose.xlu0.b32.start [1/16] %v952, 128
        %955 = vxpose.xlu0.b32.cont [2/16] %v953, 128
        %956 = vxpose.xlu0.b32.cont [3/16] 0.0, 128
        %957 = vxpose.xlu0.b32.cont [4/16] 0.0, 128
        %958 = vxpose.xlu0.b32.cont [5/16] 0.0, 128
        %959 = vxpose.xlu0.b32.cont [6/16] 0.0, 128
        %960 = vxpose.xlu0.b32.cont [7/16] 0.0, 128
        %961 = vxpose.xlu0.b32.cont [8/16] 0.0, 128
        %962 = vxpose.xlu0.b32.cont [9/16] 0.0, 128
        %963 = vxpose.xlu0.b32.cont [10/16] 0.0, 128
        %964 = vxpose.xlu0.b32.cont [11/16] 0.0, 128
        %965 = vxpose.xlu0.b32.cont [12/16] 0.0, 128
        %966 = vxpose.xlu0.b32.cont [13/16] 0.0, 128
        %967 = vxpose.xlu0.b32.cont [14/16] 0.0, 128
        %968 = vxpose.xlu0.b32.cont [15/16] 0.0, 128
        %969 = vxpose.xlu0.b32.end [16/16] 0.0, 128
        %v970 = vpop.trf.xlu0
        %v971 = vpop.trf.xlu0
        %v972 = vpop.trf.xlu0
        %v973 = vpop.trf.xlu0
        %v974 = vpop.trf.xlu0
        %v975 = vpop.trf.xlu0
        %v976 = vpop.trf.xlu0
        %v977 = vpop.trf.xlu0
        %v978 = vpop.trf.xlu0
        %v979 = vpop.trf.xlu0
        %v980 = vpop.trf.xlu0
        %v981 = vpop.trf.xlu0
        %v982 = vpop.trf.xlu0
        %v983 = vpop.trf.xlu0
        %v984 = vpop.trf.xlu0
        %v985 = vpop.trf.xlu0
        %s986 = scalar_lea.vmem [#allocation3], 672
        %987 = vst.msk [vmem:[%s986] sm:$0xff] %vm650, %v970
        %988 = vst.msk [vmem:[%s986 + $0x8] sm:$0xff] %vm650, %v971
        %989 = vst.msk [vmem:[%s986 + $0x10] sm:$0xff] %vm650, %v972
        %990 = vst.msk [vmem:[%s986 + $0x18] sm:$0xff] %vm650, %v973
        %991 = vst.msk [vmem:[%s986 + $0x20] sm:$0xff] %vm650, %v974
        %992 = vst.msk [vmem:[%s986 + $0x28] sm:$0xff] %vm650, %v975
        %993 = vst.msk [vmem:[%s986 + $0x30] sm:$0xff] %vm650, %v976
        %994 = vst.msk [vmem:[%s986 + $0x38] sm:$0xff] %vm650, %v977
        %995 = vst.msk [vmem:[%s986 + $0x40] sm:$0xff] %vm650, %v978
        %996 = vst.msk [vmem:[%s986 + $0x48] sm:$0xff] %vm650, %v979
        %997 = vst.msk [vmem:[%s986 + $0x50] sm:$0xff] %vm650, %v980
        %998 = vst.msk [vmem:[%s986 + $0x58] sm:$0xff] %vm650, %v981
        %s999 = scalar_lea.vmem [#allocation2], 128
        %v1000 = vld [vmem:[%s999] sm:$0xff]
        %v1001 = vld [vmem:[%s999 + $0x8] sm:$0x7f]
        %1002 = vxpose.xlu0.b32.start [1/16] %v1000, 128
        %1003 = vxpose.xlu0.b32.cont [2/16] %v1001, 128
        %1004 = vxpose.xlu0.b32.cont [3/16] 0.0, 128
        %1005 = vxpose.xlu0.b32.cont [4/16] 0.0, 128
        %1006 = vxpose.xlu0.b32.cont [5/16] 0.0, 128
        %1007 = vxpose.xlu0.b32.cont [6/16] 0.0, 128
        %1008 = vxpose.xlu0.b32.cont [7/16] 0.0, 128
        %1009 = vxpose.xlu0.b32.cont [8/16] 0.0, 128
        %1010 = vxpose.xlu0.b32.cont [9/16] 0.0, 128
        %1011 = vxpose.xlu0.b32.cont [10/16] 0.0, 128
        %1012 = vxpose.xlu0.b32.cont [11/16] 0.0, 128
        %1013 = vxpose.xlu0.b32.cont [12/16] 0.0, 128
        %1014 = vxpose.xlu0.b32.cont [13/16] 0.0, 128
        %1015 = vxpose.xlu0.b32.cont [14/16] 0.0, 128
        %1016 = vxpose.xlu0.b32.cont [15/16] 0.0, 128
        %1017 = vxpose.xlu0.b32.end [16/16] 0.0, 128
        %v1018 = vpop.trf.xlu0
        %v1019 = vpop.trf.xlu0
        %v1020 = vpop.trf.xlu0
        %v1021 = vpop.trf.xlu0
        %v1022 = vpop.trf.xlu0
        %v1023 = vpop.trf.xlu0
        %v1024 = vpop.trf.xlu0
        %v1025 = vpop.trf.xlu0
        %v1026 = vpop.trf.xlu0
        %v1027 = vpop.trf.xlu0
        %v1028 = vpop.trf.xlu0
        %v1029 = vpop.trf.xlu0
        %v1030 = vpop.trf.xlu0
        %v1031 = vpop.trf.xlu0
        %v1032 = vpop.trf.xlu0
        %v1033 = vpop.trf.xlu0
        %s1034 = scalar_lea.vmem [#allocation3], 768
        %1035 = vst.msk [vmem:[%s1034] sm:$0xff] %vm650, %v1018
        %1036 = vst.msk [vmem:[%s1034 + $0x8] sm:$0xff] %vm650, %v1019
        %1037 = vst.msk [vmem:[%s1034 + $0x10] sm:$0xff] %vm650, %v1020
        %1038 = vst.msk [vmem:[%s1034 + $0x18] sm:$0xff] %vm650, %v1021
        %1039 = vst.msk [vmem:[%s1034 + $0x20] sm:$0xff] %vm650, %v1022
        %1040 = vst.msk [vmem:[%s1034 + $0x28] sm:$0xff] %vm650, %v1023
        %1041 = vst.msk [vmem:[%s1034 + $0x30] sm:$0xff] %vm650, %v1024
        %1042 = vst.msk [vmem:[%s1034 + $0x38] sm:$0xff] %vm650, %v1025
        %1043 = vst.msk [vmem:[%s1034 + $0x40] sm:$0xff] %vm650, %v1026
        %1044 = vst.msk [vmem:[%s1034 + $0x48] sm:$0xff] %vm650, %v1027
        %1045 = vst.msk [vmem:[%s1034 + $0x50] sm:$0xff] %vm650, %v1028
        %1046 = vst.msk [vmem:[%s1034 + $0x58] sm:$0xff] %vm650, %v1029
        %v1047 = vld [vmem:[#allocation3] ss:$4 sm:$0xff]
        %s1048 = scalar_lea.vmem [#allocation3], 32
        %v1049 = vld [vmem:[%s1048] ss:$4 sm:$0xff]
        %s1050 = scalar_lea.vmem [#allocation3], 64
        %v1051 = vld [vmem:[%s1050] ss:$4 sm:$0xff]
        %s1052 = scalar_lea.vmem [#allocation3], 96
        %v1053 = vld [vmem:[%s1052] ss:$4 sm:$0xff]
        %s1054 = scalar_lea.vmem [#allocation3], 128
        %v1055 = vld [vmem:[%s1054] ss:$4 sm:$0xff]
        %s1056 = scalar_lea.vmem [#allocation3], 160
        %v1057 = vld [vmem:[%s1056] ss:$4 sm:$0xff]
        %s1058 = scalar_lea.vmem [#allocation3], 192
        %v1059 = vld [vmem:[%s1058] ss:$4 sm:$0xff]
        %s1060 = scalar_lea.vmem [#allocation3], 224
        %v1061 = vld [vmem:[%s1060] ss:$4 sm:$0xff]
        %s1062 = scalar_lea.vmem [#allocation3], 256
        %v1063 = vld [vmem:[%s1062] ss:$4 sm:$0xff]
        %s1064 = scalar_lea.vmem [#allocation3], 288
        %v1065 = vld [vmem:[%s1064] ss:$4 sm:$0xff]
        %s1066 = scalar_lea.vmem [#allocation3], 320
        %v1067 = vld [vmem:[%s1066] ss:$4 sm:$0xff]
        %s1068 = scalar_lea.vmem [#allocation3], 352
        %v1069 = vld [vmem:[%s1068] ss:$4 sm:$0xff]
        %s1070 = scalar_lea.vmem [#allocation3], 384
        %v1071 = vld [vmem:[%s1070] ss:$4 sm:$0xff]
        %s1072 = scalar_lea.vmem [#allocation3], 416
        %v1073 = vld [vmem:[%s1072] ss:$4 sm:$0xff]
        %s1074 = scalar_lea.vmem [#allocation3], 448
        %v1075 = vld [vmem:[%s1074] ss:$4 sm:$0xff]
        %s1076 = scalar_lea.vmem [#allocation3], 480
        %v1077 = vld [vmem:[%s1076] ss:$4 sm:$0xff]
        %s1078 = scalar_lea.vmem [#allocation3], 512
        %v1079 = vld [vmem:[%s1078] ss:$4 sm:$0xff]
        %s1080 = scalar_lea.vmem [#allocation3], 544
        %v1081 = vld [vmem:[%s1080] ss:$4 sm:$0xff]
        %s1082 = scalar_lea.vmem [#allocation3], 576
        %v1083 = vld [vmem:[%s1082] ss:$4 sm:$0xff]
        %s1084 = scalar_lea.vmem [#allocation3], 608
        %v1085 = vld [vmem:[%s1084] ss:$4 sm:$0xff]
        %s1086 = scalar_lea.vmem [#allocation3], 640
        %v1087 = vld [vmem:[%s1086] ss:$4 sm:$0xff]
        %s1088 = scalar_lea.vmem [#allocation3], 672
        %v1089 = vld [vmem:[%s1088] ss:$4 sm:$0xff]
        %s1090 = scalar_lea.vmem [#allocation3], 704
        %v1091 = vld [vmem:[%s1090] ss:$4 sm:$0xff]
        %s1092 = scalar_lea.vmem [#allocation3], 736
        %v1093 = vld [vmem:[%s1092] ss:$4 sm:$0xff]
        %s1094 = scalar_lea.vmem [#allocation3], 768
        %v1095 = vld [vmem:[%s1094] ss:$4 sm:$0xff]
        %s1096 = scalar_lea.vmem [#allocation3], 800
        %v1097 = vld [vmem:[%s1096] ss:$4 sm:$0xff]
        %s1098 = scalar_lea.vmem [#allocation3], 832
        %v1099 = vld [vmem:[%s1098] ss:$4 sm:$0xff]
        %s1100 = scalar_lea.vmem [#allocation3], 1
        %v1101 = vld [vmem:[%s1100] ss:$4 sm:$0xff]
        %s1102 = scalar_lea.vmem [#allocation3], 33
        %v1103 = vld [vmem:[%s1102] ss:$4 sm:$0xff]
        %s1104 = scalar_lea.vmem [#allocation3], 65
        %v1105 = vld [vmem:[%s1104] ss:$4 sm:$0xff]
        %s1106 = scalar_lea.vmem [#allocation3], 97
        %v1107 = vld [vmem:[%s1106] ss:$4 sm:$0xff]
        %s1108 = scalar_lea.vmem [#allocation3], 129
        %v1109 = vld [vmem:[%s1108] ss:$4 sm:$0xff]
        %s1110 = scalar_lea.vmem [#allocation3], 161
        %v1111 = vld [vmem:[%s1110] ss:$4 sm:$0xff]
        %s1112 = scalar_lea.vmem [#allocation3], 193
        %v1113 = vld [vmem:[%s1112] ss:$4 sm:$0xff]
        %s1114 = scalar_lea.vmem [#allocation3], 225
        %v1115 = vld [vmem:[%s1114] ss:$4 sm:$0xff]
        %s1116 = scalar_lea.vmem [#allocation3], 257
        %v1117 = vld [vmem:[%s1116] ss:$4 sm:$0xff]
        %s1118 = scalar_lea.vmem [#allocation3], 289
        %v1119 = vld [vmem:[%s1118] ss:$4 sm:$0xff]
        %s1120 = scalar_lea.vmem [#allocation3], 321
        %v1121 = vld [vmem:[%s1120] ss:$4 sm:$0xff]
        %s1122 = scalar_lea.vmem [#allocation3], 353
        %v1123 = vld [vmem:[%s1122] ss:$4 sm:$0xff]
        %s1124 = scalar_lea.vmem [#allocation3], 385
        %v1125 = vld [vmem:[%s1124] ss:$4 sm:$0xff]
        %s1126 = scalar_lea.vmem [#allocation3], 417
        %v1127 = vld [vmem:[%s1126] ss:$4 sm:$0xff]
        %s1128 = scalar_lea.vmem [#allocation3], 449
        %v1129 = vld [vmem:[%s1128] ss:$4 sm:$0xff]
        %s1130 = scalar_lea.vmem [#allocation3], 481
        %v1131 = vld [vmem:[%s1130] ss:$4 sm:$0xff]
        %s1132 = scalar_lea.vmem [#allocation3], 513
        %v1133 = vld [vmem:[%s1132] ss:$4 sm:$0xff]
        %s1134 = scalar_lea.vmem [#allocation3], 545
        %v1135 = vld [vmem:[%s1134] ss:$4 sm:$0xff]
        %s1136 = scalar_lea.vmem [#allocation3], 577
        %v1137 = vld [vmem:[%s1136] ss:$4 sm:$0xff]
        %s1138 = scalar_lea.vmem [#allocation3], 609
        %v1139 = vld [vmem:[%s1138] ss:$4 sm:$0xff]
        %s1140 = scalar_lea.vmem [#allocation3], 641
        %v1141 = vld [vmem:[%s1140] ss:$4 sm:$0xff]
        %s1142 = scalar_lea.vmem [#allocation3], 673
        %v1143 = vld [vmem:[%s1142] ss:$4 sm:$0xff]
        %s1144 = scalar_lea.vmem [#allocation3], 705
        %v1145 = vld [vmem:[%s1144] ss:$4 sm:$0xff]
        %s1146 = scalar_lea.vmem [#allocation3], 737
        %v1147 = vld [vmem:[%s1146] ss:$4 sm:$0xff]
        %s1148 = scalar_lea.vmem [#allocation3], 769
        %v1149 = vld [vmem:[%s1148] ss:$4 sm:$0xff]
        %s1150 = scalar_lea.vmem [#allocation3], 801
        %v1151 = vld [vmem:[%s1150] ss:$4 sm:$0xff]
        %s1152 = scalar_lea.vmem [#allocation3], 833
        %v1153 = vld [vmem:[%s1152] ss:$4 sm:$0xff]
        %s1154 = scalar_lea.vmem [#allocation3], 2
        %v1155 = vld [vmem:[%s1154] ss:$4 sm:$0xff]
        %s1156 = scalar_lea.vmem [#allocation3], 34
        %v1157 = vld [vmem:[%s1156] ss:$4 sm:$0xff]
        %s1158 = scalar_lea.vmem [#allocation3], 66
        %v1159 = vld [vmem:[%s1158] ss:$4 sm:$0xff]
        %s1160 = scalar_lea.vmem [#allocation3], 98
        %v1161 = vld [vmem:[%s1160] ss:$4 sm:$0xff]
        %s1162 = scalar_lea.vmem [#allocation3], 130
        %v1163 = vld [vmem:[%s1162] ss:$4 sm:$0xff]
        %s1164 = scalar_lea.vmem [#allocation3], 162
        %v1165 = vld [vmem:[%s1164] ss:$4 sm:$0xff]
        %s1166 = scalar_lea.vmem [#allocation3], 194
        %v1167 = vld [vmem:[%s1166] ss:$4 sm:$0xff]
        %s1168 = scalar_lea.vmem [#allocation3], 226
        %v1169 = vld [vmem:[%s1168] ss:$4 sm:$0xff]
        %s1170 = scalar_lea.vmem [#allocation3], 258
        %v1171 = vld [vmem:[%s1170] ss:$4 sm:$0xff]
        %s1172 = scalar_lea.vmem [#allocation3], 290
        %v1173 = vld [vmem:[%s1172] ss:$4 sm:$0xff]
        %s1174 = scalar_lea.vmem [#allocation3], 322
        %v1175 = vld [vmem:[%s1174] ss:$4 sm:$0xff]
        %s1176 = scalar_lea.vmem [#allocation3], 354
        %v1177 = vld [vmem:[%s1176] ss:$4 sm:$0xff]
        %s1178 = scalar_lea.vmem [#allocation3], 386
        %v1179 = vld [vmem:[%s1178] ss:$4 sm:$0xff]
        %s1180 = scalar_lea.vmem [#allocation3], 418
        %v1181 = vld [vmem:[%s1180] ss:$4 sm:$0xff]
        %s1182 = scalar_lea.vmem [#allocation3], 450
        %v1183 = vld [vmem:[%s1182] ss:$4 sm:$0xff]
        %s1184 = scalar_lea.vmem [#allocation3], 482
        %v1185 = vld [vmem:[%s1184] ss:$4 sm:$0xff]
        %s1186 = scalar_lea.vmem [#allocation3], 514
        %v1187 = vld [vmem:[%s1186] ss:$4 sm:$0xff]
        %s1188 = scalar_lea.vmem [#allocation3], 546
        %v1189 = vld [vmem:[%s1188] ss:$4 sm:$0xff]
        %s1190 = scalar_lea.vmem [#allocation3], 578
        %v1191 = vld [vmem:[%s1190] ss:$4 sm:$0xff]
        %s1192 = scalar_lea.vmem [#allocation3], 610
        %v1193 = vld [vmem:[%s1192] ss:$4 sm:$0xff]
        %s1194 = scalar_lea.vmem [#allocation3], 642
        %v1195 = vld [vmem:[%s1194] ss:$4 sm:$0xff]
        %s1196 = scalar_lea.vmem [#allocation3], 674
        %v1197 = vld [vmem:[%s1196] ss:$4 sm:$0xff]
        %s1198 = scalar_lea.vmem [#allocation3], 706
        %v1199 = vld [vmem:[%s1198] ss:$4 sm:$0xff]
        %s1200 = scalar_lea.vmem [#allocation3], 738
        %v1201 = vld [vmem:[%s1200] ss:$4 sm:$0xff]
        %s1202 = scalar_lea.vmem [#allocation3], 770
        %v1203 = vld [vmem:[%s1202] ss:$4 sm:$0xff]
        %s1204 = scalar_lea.vmem [#allocation3], 802
        %v1205 = vld [vmem:[%s1204] ss:$4 sm:$0xff]
        %s1206 = scalar_lea.vmem [#allocation3], 834
        %v1207 = vld [vmem:[%s1206] ss:$4 sm:$0xff]
        %s1208 = scalar_lea.vmem [#allocation3], 3
        %v1209 = vld [vmem:[%s1208] ss:$4 sm:$0xff]
        %s1210 = scalar_lea.vmem [#allocation3], 35
        %v1211 = vld [vmem:[%s1210] ss:$4 sm:$0xff]
        %s1212 = scalar_lea.vmem [#allocation3], 67
        %v1213 = vld [vmem:[%s1212] ss:$4 sm:$0xff]
        %s1214 = scalar_lea.vmem [#allocation3], 99
        %v1215 = vld [vmem:[%s1214] ss:$4 sm:$0xff]
        %s1216 = scalar_lea.vmem [#allocation3], 131
        %v1217 = vld [vmem:[%s1216] ss:$4 sm:$0xff]
        %s1218 = scalar_lea.vmem [#allocation3], 163
        %v1219 = vld [vmem:[%s1218] ss:$4 sm:$0xff]
        %s1220 = scalar_lea.vmem [#allocation3], 195
        %v1221 = vld [vmem:[%s1220] ss:$4 sm:$0xff]
        %s1222 = scalar_lea.vmem [#allocation3], 227
        %v1223 = vld [vmem:[%s1222] ss:$4 sm:$0xff]
        %s1224 = scalar_lea.vmem [#allocation3], 259
        %v1225 = vld [vmem:[%s1224] ss:$4 sm:$0xff]
        %s1226 = scalar_lea.vmem [#allocation3], 291
        %v1227 = vld [vmem:[%s1226] ss:$4 sm:$0xff]
        %s1228 = scalar_lea.vmem [#allocation3], 323
        %v1229 = vld [vmem:[%s1228] ss:$4 sm:$0xff]
        %s1230 = scalar_lea.vmem [#allocation3], 355
        %v1231 = vld [vmem:[%s1230] ss:$4 sm:$0xff]
        %s1232 = scalar_lea.vmem [#allocation3], 387
        %v1233 = vld [vmem:[%s1232] ss:$4 sm:$0xff]
        %s1234 = scalar_lea.vmem [#allocation3], 419
        %v1235 = vld [vmem:[%s1234] ss:$4 sm:$0xff]
        %s1236 = scalar_lea.vmem [#allocation3], 451
        %v1237 = vld [vmem:[%s1236] ss:$4 sm:$0xff]
        %s1238 = scalar_lea.vmem [#allocation3], 483
        %v1239 = vld [vmem:[%s1238] ss:$4 sm:$0xff]
        %s1240 = scalar_lea.vmem [#allocation3], 515
        %v1241 = vld [vmem:[%s1240] ss:$4 sm:$0xff]
        %s1242 = scalar_lea.vmem [#allocation3], 547
        %v1243 = vld [vmem:[%s1242] ss:$4 sm:$0xff]
        %s1244 = scalar_lea.vmem [#allocation3], 579
        %v1245 = vld [vmem:[%s1244] ss:$4 sm:$0xff]
        %s1246 = scalar_lea.vmem [#allocation3], 611
        %v1247 = vld [vmem:[%s1246] ss:$4 sm:$0xff]
        %s1248 = scalar_lea.vmem [#allocation3], 643
        %v1249 = vld [vmem:[%s1248] ss:$4 sm:$0xff]
        %s1250 = scalar_lea.vmem [#allocation3], 675
        %v1251 = vld [vmem:[%s1250] ss:$4 sm:$0xff]
        %s1252 = scalar_lea.vmem [#allocation3], 707
        %v1253 = vld [vmem:[%s1252] ss:$4 sm:$0xff]
        %s1254 = scalar_lea.vmem [#allocation3], 739
        %v1255 = vld [vmem:[%s1254] ss:$4 sm:$0xff]
        %s1256 = scalar_lea.vmem [#allocation3], 771
        %v1257 = vld [vmem:[%s1256] ss:$4 sm:$0xff]
        %s1258 = scalar_lea.vmem [#allocation3], 803
        %v1259 = vld [vmem:[%s1258] ss:$4 sm:$0xff]
        %s1260 = scalar_lea.vmem [#allocation3], 835
        %v1261 = vld [vmem:[%s1260] ss:$4 sm:$0xff]
        %v1262 = vmax.f32 %v1155, %v1209
        %v1263 = vmax.f32 %v1157, %v1211
        %v1264 = vmax.f32 %v1159, %v1213
        %v1265 = vmax.f32 %v1161, %v1215
        %v1266 = vmax.f32 %v1163, %v1217
        %v1267 = vmax.f32 %v1165, %v1219
        %v1268 = vmax.f32 %v1167, %v1221
        %v1269 = vmax.f32 %v1169, %v1223
        %v1270 = vmax.f32 %v1171, %v1225
        %v1271 = vmax.f32 %v1173, %v1227
        %v1272 = vmax.f32 %v1175, %v1229
        %v1273 = vmax.f32 %v1177, %v1231
        %v1274 = vmax.f32 %v1179, %v1233
        %v1275 = vmax.f32 %v1181, %v1235
        %v1276 = vmax.f32 %v1183, %v1237
        %v1277 = vmax.f32 %v1185, %v1239
        %v1278 = vmax.f32 %v1187, %v1241
        %v1279 = vmax.f32 %v1189, %v1243
        %v1280 = vmax.f32 %v1191, %v1245
        %v1281 = vmax.f32 %v1193, %v1247
        %v1282 = vmax.f32 %v1195, %v1249
        %v1283 = vmax.f32 %v1197, %v1251
        %v1284 = vmax.f32 %v1199, %v1253
        %v1285 = vmax.f32 %v1201, %v1255
        %v1286 = vmax.f32 %v1203, %v1257
        %v1287 = vmax.f32 %v1205, %v1259
        %v1288 = vmax.f32 %v1207, %v1261
        %v1289 = vmax.f32 %v1047, %v1101
        %v1290 = vmax.f32 %v1049, %v1103
        %v1291 = vmax.f32 %v1051, %v1105
        %v1292 = vmax.f32 %v1053, %v1107
        %v1293 = vmax.f32 %v1055, %v1109
        %v1294 = vmax.f32 %v1057, %v1111
        %v1295 = vmax.f32 %v1059, %v1113
        %v1296 = vmax.f32 %v1061, %v1115
        %v1297 = vmax.f32 %v1063, %v1117
        %v1298 = vmax.f32 %v1065, %v1119
        %v1299 = vmax.f32 %v1067, %v1121
        %v1300 = vmax.f32 %v1069, %v1123
        %v1301 = vmax.f32 %v1071, %v1125
        %v1302 = vmax.f32 %v1073, %v1127
        %v1303 = vmax.f32 %v1075, %v1129
        %v1304 = vmax.f32 %v1077, %v1131
        %v1305 = vmax.f32 %v1079, %v1133
        %v1306 = vmax.f32 %v1081, %v1135
        %v1307 = vmax.f32 %v1083, %v1137
        %v1308 = vmax.f32 %v1085, %v1139
        %v1309 = vmax.f32 %v1087, %v1141
        %v1310 = vmax.f32 %v1089, %v1143
        %v1311 = vmax.f32 %v1091, %v1145
        %v1312 = vmax.f32 %v1093, %v1147
        %v1313 = vmax.f32 %v1095, %v1149
        %v1314 = vmax.f32 %v1097, %v1151
        %v1315 = vmax.f32 %v1099, %v1153
        %v1316 = vmax.f32 %v1289, %v1262
        %v1317 = vmax.f32 %v1290, %v1263
        %v1318 = vmax.f32 %v1291, %v1264
        %v1319 = vmax.f32 %v1292, %v1265
        %v1320 = vmax.f32 %v1293, %v1266
        %v1321 = vmax.f32 %v1294, %v1267
        %v1322 = vmax.f32 %v1295, %v1268
        %v1323 = vmax.f32 %v1296, %v1269
        %v1324 = vmax.f32 %v1297, %v1270
        %v1325 = vmax.f32 %v1298, %v1271
        %v1326 = vmax.f32 %v1299, %v1272
        %v1327 = vmax.f32 %v1300, %v1273
        %v1328 = vmax.f32 %v1301, %v1274
        %v1329 = vmax.f32 %v1302, %v1275
        %v1330 = vmax.f32 %v1303, %v1276
        %v1331 = vmax.f32 %v1304, %v1277
        %v1332 = vmax.f32 %v1305, %v1278
        %v1333 = vmax.f32 %v1306, %v1279
        %v1334 = vmax.f32 %v1307, %v1280
        %v1335 = vmax.f32 %v1308, %v1281
        %v1336 = vmax.f32 %v1309, %v1282
        %v1337 = vmax.f32 %v1310, %v1283
        %v1338 = vmax.f32 %v1311, %v1284
        %v1339 = vmax.f32 %v1312, %v1285
        %v1340 = vmax.f32 %v1313, %v1286
        %v1341 = vmax.f32 %v1314, %v1287
        %v1342 = vmax.f32 %v1315, %v1288
        %v1370 = vrot.slane %v1316, 1
        %v1371 = vrot.slane %v1317, 1
        %v1372 = vsel %vm359, %v1370, %v1371
        %v1373 = vrot.slane %v1318, 1
        %v1374 = vsel %vm359, %v1371, %v1373
        %v1375 = vrot.slane %v1319, 1
        %v1376 = vrot.slane %v1320, 1
        %v1377 = vsel %vm359, %v1375, %v1376
        %v1378 = vrot.slane %v1321, 1
        %v1379 = vsel %vm359, %v1376, %v1378
        %v1380 = vrot.slane %v1322, 1
        %v1381 = vrot.slane %v1323, 1
        %v1382 = vsel %vm359, %v1380, %v1381
        %v1383 = vrot.slane %v1324, 1
        %v1384 = vsel %vm359, %v1381, %v1383
        %v1385 = vrot.slane %v1325, 1
        %v1386 = vrot.slane %v1326, 1
        %v1387 = vsel %vm359, %v1385, %v1386
        %v1388 = vrot.slane %v1327, 1
        %v1389 = vsel %vm359, %v1386, %v1388
        %v1390 = vrot.slane %v1328, 1
        %v1391 = vrot.slane %v1329, 1
        %v1392 = vsel %vm359, %v1390, %v1391
        %v1393 = vrot.slane %v1330, 1
        %v1394 = vsel %vm359, %v1391, %v1393
        %v1395 = vrot.slane %v1331, 1
        %v1396 = vrot.slane %v1332, 1
        %v1397 = vsel %vm359, %v1395, %v1396
        %v1398 = vrot.slane %v1333, 1
        %v1399 = vsel %vm359, %v1396, %v1398
        %v1400 = vrot.slane %v1334, 1
        %v1401 = vrot.slane %v1335, 1
        %v1402 = vsel %vm359, %v1400, %v1401
        %v1403 = vrot.slane %v1336, 1
        %v1404 = vsel %vm359, %v1401, %v1403
        %v1405 = vrot.slane %v1337, 1
        %v1406 = vrot.slane %v1338, 1
        %v1407 = vsel %vm359, %v1405, %v1406
        %v1408 = vrot.slane %v1339, 1
        %v1409 = vsel %vm359, %v1406, %v1408
        %v1410 = vrot.slane %v1340, 1
        %v1411 = vrot.slane %v1341, 1
        %v1412 = vsel %vm359, %v1410, %v1411
        %v1413 = vrot.slane %v1342, 1
        %v1414 = vsel %vm359, %v1411, %v1413
        %v1442 = vmax.f32 %v1316, %v1372
        %v1443 = vmax.f32 %v1317, %v1374
        %v1444 = vmax.f32 %v1318, %v1373
        %v1445 = vmax.f32 %v1319, %v1377
        %v1446 = vmax.f32 %v1320, %v1379
        %v1447 = vmax.f32 %v1321, %v1378
        %v1448 = vmax.f32 %v1322, %v1382
        %v1449 = vmax.f32 %v1323, %v1384
        %v1450 = vmax.f32 %v1324, %v1383
        %v1451 = vmax.f32 %v1325, %v1387
        %v1452 = vmax.f32 %v1326, %v1389
        %v1453 = vmax.f32 %v1327, %v1388
        %v1454 = vmax.f32 %v1328, %v1392
        %v1455 = vmax.f32 %v1329, %v1394
        %v1456 = vmax.f32 %v1330, %v1393
        %v1457 = vmax.f32 %v1331, %v1397
        %v1458 = vmax.f32 %v1332, %v1399
        %v1459 = vmax.f32 %v1333, %v1398
        %v1460 = vmax.f32 %v1334, %v1402
        %v1461 = vmax.f32 %v1335, %v1404
        %v1462 = vmax.f32 %v1336, %v1403
        %v1463 = vmax.f32 %v1337, %v1407
        %v1464 = vmax.f32 %v1338, %v1409
        %v1465 = vmax.f32 %v1339, %v1408
        %v1466 = vmax.f32 %v1340, %v1412
        %v1467 = vmax.f32 %v1341, %v1414
        %v1468 = vmax.f32 %v1342, %v1413
        %1469 = vst.msk [vmem:[%s142] sm:$0xff] %vm650, %v1442
        %1470 = vst.msk [vmem:[%s142 + $0x8] sm:$0xff] %vm650, %v1443
        %vm1471 = vcmask 120832
        %1472 = vst.msk [vmem:[%s142 + $0x10] sm:$0x7f] %vm1471, %v1444
        %1473 = vst.msk [vmem:[%s142 + $0x18] sm:$0xff] %vm650, %v1445
        %1474 = vst.msk [vmem:[%s142 + $0x20] sm:$0xff] %vm650, %v1446
        %1475 = vst.msk [vmem:[%s142 + $0x28] sm:$0x7f] %vm1471, %v1447
        %1476 = vst.msk [vmem:[%s142 + $0x30] sm:$0xff] %vm650, %v1448
        %1477 = vst.msk [vmem:[%s142 + $0x38] sm:$0xff] %vm650, %v1449
        %1478 = vst.msk [vmem:[%s142 + $0x40] sm:$0x7f] %vm1471, %v1450
        %1479 = vst.msk [vmem:[%s142 + $0x48] sm:$0xff] %vm650, %v1451
        %1480 = vst.msk [vmem:[%s142 + $0x50] sm:$0xff] %vm650, %v1452
        %1481 = vst.msk [vmem:[%s142 + $0x58] sm:$0x7f] %vm1471, %v1453
        %1482 = vst.msk [vmem:[%s142 + $0x60] sm:$0xff] %vm650, %v1454
        %1483 = vst.msk [vmem:[%s142 + $0x68] sm:$0xff] %vm650, %v1455
        %1484 = vst.msk [vmem:[%s142 + $0x70] sm:$0x7f] %vm1471, %v1456
        %1485 = vst.msk [vmem:[%s142 + $0x78] sm:$0xff] %vm650, %v1457
        %1486 = vst.msk [vmem:[%s142 + $0x80] sm:$0xff] %vm650, %v1458
        %1487 = vst.msk [vmem:[%s142 + $0x88] sm:$0x7f] %vm1471, %v1459
        %1488 = vst.msk [vmem:[%s142 + $0x90] sm:$0xff] %vm650, %v1460
        %1489 = vst.msk [vmem:[%s142 + $0x98] sm:$0xff] %vm650, %v1461
        %1490 = vst.msk [vmem:[%s142 + $0xa0] sm:$0x7f] %vm1471, %v1462
        %1491 = vst.msk [vmem:[%s142 + $0xa8] sm:$0xff] %vm650, %v1463
        %1492 = vst.msk [vmem:[%s142 + $0xb0] sm:$0xff] %vm650, %v1464
        %1493 = vst.msk [vmem:[%s142 + $0xb8] sm:$0x7f] %vm1471, %v1465
        %1494 = vst.msk [vmem:[%s142 + $0xc0] sm:$0xff] %vm650, %v1466
        %1495 = vst.msk [vmem:[%s142 + $0xc8] sm:$0xff] %vm650, %v1467
        %1496 = vst.msk [vmem:[%s142 + $0xd0] sm:$0x7f] %vm1471, %v1468
        %v1497 = vld [vmem:[%s142 + $0x1] sm:$0xff]
        %v1498 = vld [vmem:[%s142 + $0x9] sm:$0xff]
        %v1499 = vld [vmem:[%s142 + $0x11] sm:$0x3f]
        %v1500 = vld [vmem:[%s142 + $0x19] sm:$0xff]
        %v1501 = vld [vmem:[%s142 + $0x21] sm:$0xff]
        %v1502 = vld [vmem:[%s142 + $0x29] sm:$0x3f]
        %v1503 = vld [vmem:[%s142 + $0x31] sm:$0xff]
        %v1504 = vld [vmem:[%s142 + $0x39] sm:$0xff]
        %v1505 = vld [vmem:[%s142 + $0x41] sm:$0x3f]
        %v1506 = vld [vmem:[%s142 + $0x49] sm:$0xff]
        %v1507 = vld [vmem:[%s142 + $0x51] sm:$0xff]
        %v1508 = vld [vmem:[%s142 + $0x59] sm:$0x3f]
        %v1509 = vld [vmem:[%s142 + $0x61] sm:$0xff]
        %v1510 = vld [vmem:[%s142 + $0x69] sm:$0xff]
        %v1511 = vld [vmem:[%s142 + $0x71] sm:$0x3f]
        %v1512 = vld [vmem:[%s142 + $0x79] sm:$0xff]
        %v1513 = vld [vmem:[%s142 + $0x81] sm:$0xff]
        %v1514 = vld [vmem:[%s142 + $0x89] sm:$0x3f]
        %v1515 = vld [vmem:[%s142 + $0x91] sm:$0xff]
        %v1516 = vld [vmem:[%s142 + $0x99] sm:$0xff]
        %v1517 = vld [vmem:[%s142 + $0xa1] sm:$0x3f]
        %v1518 = vld [vmem:[%s142 + $0xa9] sm:$0xff]
        %v1519 = vld [vmem:[%s142 + $0xb1] sm:$0xff]
        %v1520 = vld [vmem:[%s142 + $0xb9] sm:$0x3f]
        %v1521 = vld [vmem:[%s142 + $0xc1] sm:$0xff]
        %v1522 = vld [vmem:[%s142 + $0xc9] sm:$0xff]
        %v1523 = vld [vmem:[%s142 + $0xd1] sm:$0x3f]
        %v1524 = vmax.f32 %v1497, %v1262
        %v1525 = vmax.f32 %v1498, %v1263
        %v1526 = vmax.f32 %v1499, %v1264
        %v1527 = vmax.f32 %v1500, %v1265
        %v1528 = vmax.f32 %v1501, %v1266
        %v1529 = vmax.f32 %v1502, %v1267
        %v1530 = vmax.f32 %v1503, %v1268
        %v1531 = vmax.f32 %v1504, %v1269
        %v1532 = vmax.f32 %v1505, %v1270
        %v1533 = vmax.f32 %v1506, %v1271
        %v1534 = vmax.f32 %v1507, %v1272
        %v1535 = vmax.f32 %v1508, %v1273
        %v1536 = vmax.f32 %v1509, %v1274
        %v1537 = vmax.f32 %v1510, %v1275
        %v1538 = vmax.f32 %v1511, %v1276
        %v1539 = vmax.f32 %v1512, %v1277
        %v1540 = vmax.f32 %v1513, %v1278
        %v1541 = vmax.f32 %v1514, %v1279
        %v1542 = vmax.f32 %v1515, %v1280
        %v1543 = vmax.f32 %v1516, %v1281
        %v1544 = vmax.f32 %v1517, %v1282
        %v1545 = vmax.f32 %v1518, %v1283
        %v1546 = vmax.f32 %v1519, %v1284
        %v1547 = vmax.f32 %v1520, %v1285
        %v1548 = vmax.f32 %v1521, %v1286
        %v1549 = vmax.f32 %v1522, %v1287
        %v1550 = vmax.f32 %v1523, %v1288
        %1551 = vst.msk [vmem:[%s142 + $0x1] sm:$0xff] %vm650, %v1524
        %1552 = vst.msk [vmem:[%s142 + $0x9] sm:$0xff] %vm650, %v1525
        %vm1553 = vcmask 119808
        %1554 = vst.msk [vmem:[%s142 + $0x11] sm:$0x3f] %vm1553, %v1526
        %1555 = vst.msk [vmem:[%s142 + $0x19] sm:$0xff] %vm650, %v1527
        %1556 = vst.msk [vmem:[%s142 + $0x21] sm:$0xff] %vm650, %v1528
        %1557 = vst.msk [vmem:[%s142 + $0x29] sm:$0x3f] %vm1553, %v1529
        %1558 = vst.msk [vmem:[%s142 + $0x31] sm:$0xff] %vm650, %v1530
        %1559 = vst.msk [vmem:[%s142 + $0x39] sm:$0xff] %vm650, %v1531
        %1560 = vst.msk [vmem:[%s142 + $0x41] sm:$0x3f] %vm1553, %v1532
        %1561 = vst.msk [vmem:[%s142 + $0x49] sm:$0xff] %vm650, %v1533
        %1562 = vst.msk [vmem:[%s142 + $0x51] sm:$0xff] %vm650, %v1534
        %1563 = vst.msk [vmem:[%s142 + $0x59] sm:$0x3f] %vm1553, %v1535
        %1564 = vst.msk [vmem:[%s142 + $0x61] sm:$0xff] %vm650, %v1536
        %1565 = vst.msk [vmem:[%s142 + $0x69] sm:$0xff] %vm650, %v1537
        %1566 = vst.msk [vmem:[%s142 + $0x71] sm:$0x3f] %vm1553, %v1538
        %1567 = vst.msk [vmem:[%s142 + $0x79] sm:$0xff] %vm650, %v1539
        %1568 = vst.msk [vmem:[%s142 + $0x81] sm:$0xff] %vm650, %v1540
        %1569 = vst.msk [vmem:[%s142 + $0x89] sm:$0x3f] %vm1553, %v1541
        %1570 = vst.msk [vmem:[%s142 + $0x91] sm:$0xff] %vm650, %v1542
        %1571 = vst.msk [vmem:[%s142 + $0x99] sm:$0xff] %vm650, %v1543
        %1572 = vst.msk [vmem:[%s142 + $0xa1] sm:$0x3f] %vm1553, %v1544
        %1573 = vst.msk [vmem:[%s142 + $0xa9] sm:$0xff] %vm650, %v1545
        %1574 = vst.msk [vmem:[%s142 + $0xb1] sm:$0xff] %vm650, %v1546
        %1575 = vst.msk [vmem:[%s142 + $0xb9] sm:$0x3f] %vm1553, %v1547
        %1576 = vst.msk [vmem:[%s142 + $0xc1] sm:$0xff] %vm650, %v1548
        %1577 = vst.msk [vmem:[%s142 + $0xc9] sm:$0xff] %vm650, %v1549
        %1578 = vst.msk [vmem:[%s142 + $0xd1] sm:$0x3f] %vm1553, %v1550
        %v1579 = vld [vmem:[%s142] sm:$0xff]
        %v1580 = vld [vmem:[%s142 + $0x8] sm:$0xff]
        %v1581 = vld [vmem:[%s142 + $0x10] sm:$0x3f]
        %v1582 = vld [vmem:[%s142 + $0x18] sm:$0xff]
        %v1583 = vld [vmem:[%s142 + $0x20] sm:$0xff]
        %v1584 = vld [vmem:[%s142 + $0x28] sm:$0x3f]
        %v1585 = vld [vmem:[%s142 + $0x30] sm:$0xff]
        %v1586 = vld [vmem:[%s142 + $0x38] sm:$0xff]
        %v1587 = vld [vmem:[%s142 + $0x40] sm:$0x3f]
        %v1588 = vld [vmem:[%s142 + $0x48] sm:$0xff]
        %v1589 = vld [vmem:[%s142 + $0x50] sm:$0xff]
        %v1590 = vld [vmem:[%s142 + $0x58] sm:$0x3f]
        %v1591 = vld [vmem:[%s142 + $0x60] sm:$0xff]
        %v1592 = vld [vmem:[%s142 + $0x68] sm:$0xff]
        %v1593 = vld [vmem:[%s142 + $0x70] sm:$0x3f]
        %v1594 = vld [vmem:[%s142 + $0x78] sm:$0xff]
        %v1595 = vld [vmem:[%s142 + $0x80] sm:$0xff]
        %v1596 = vld [vmem:[%s142 + $0x88] sm:$0x3f]
        %v1597 = vld [vmem:[%s142 + $0x90] sm:$0xff]
        %v1598 = vld [vmem:[%s142 + $0x98] sm:$0xff]
        %v1599 = vld [vmem:[%s142 + $0xa0] sm:$0x3f]
        %v1600 = vld [vmem:[%s142 + $0xa8] sm:$0xff]
        %v1601 = vld [vmem:[%s142 + $0xb0] sm:$0xff]
        %v1602 = vld [vmem:[%s142 + $0xb8] sm:$0x3f]
        %v1603 = vld [vmem:[%s142 + $0xc0] sm:$0xff]
        %v1604 = vld [vmem:[%s142 + $0xc8] sm:$0xff]
        %v1605 = vld [vmem:[%s142 + $0xd0] sm:$0x3f]
        %v1633 = vrot.slane %v1047, 2
        %v1634 = vrot.slane %v1049, 2
        %v1635 = vsel %vm534, %v1633, %v1634
        %v1636 = vrot.slane %v1051, 2
        %v1637 = vsel %vm534, %v1634, %v1636
        %v1638 = vrot.slane %v1053, 2
        %v1639 = vrot.slane %v1055, 2
        %v1640 = vsel %vm534, %v1638, %v1639
        %v1641 = vrot.slane %v1057, 2
        %v1642 = vsel %vm534, %v1639, %v1641
        %v1643 = vrot.slane %v1059, 2
        %v1644 = vrot.slane %v1061, 2
        %v1645 = vsel %vm534, %v1643, %v1644
        %v1646 = vrot.slane %v1063, 2
        %v1647 = vsel %vm534, %v1644, %v1646
        %v1648 = vrot.slane %v1065, 2
        %v1649 = vrot.slane %v1067, 2
        %v1650 = vsel %vm534, %v1648, %v1649
        %v1651 = vrot.slane %v1069, 2
        %v1652 = vsel %vm534, %v1649, %v1651
        %v1653 = vrot.slane %v1071, 2
        %v1654 = vrot.slane %v1073, 2
        %v1655 = vsel %vm534, %v1653, %v1654
        %v1656 = vrot.slane %v1075, 2
        %v1657 = vsel %vm534, %v1654, %v1656
        %v1658 = vrot.slane %v1077, 2
        %v1659 = vrot.slane %v1079, 2
        %v1660 = vsel %vm534, %v1658, %v1659
        %v1661 = vrot.slane %v1081, 2
        %v1662 = vsel %vm534, %v1659, %v1661
        %v1663 = vrot.slane %v1083, 2
        %v1664 = vrot.slane %v1085, 2
        %v1665 = vsel %vm534, %v1663, %v1664
        %v1666 = vrot.slane %v1087, 2
        %v1667 = vsel %vm534, %v1664, %v1666
        %v1668 = vrot.slane %v1089, 2
        %v1669 = vrot.slane %v1091, 2
        %v1670 = vsel %vm534, %v1668, %v1669
        %v1671 = vrot.slane %v1093, 2
        %v1672 = vsel %vm534, %v1669, %v1671
        %v1673 = vrot.slane %v1095, 2
        %v1674 = vrot.slane %v1097, 2
        %v1675 = vsel %vm534, %v1673, %v1674
        %v1676 = vrot.slane %v1099, 2
        %v1677 = vsel %vm534, %v1674, %v1676
        %v1705 = vmax.f32 %v1579, %v1635
        %v1706 = vmax.f32 %v1580, %v1637
        %v1707 = vmax.f32 %v1581, %v1636
        %v1708 = vmax.f32 %v1582, %v1640
        %v1709 = vmax.f32 %v1583, %v1642
        %v1710 = vmax.f32 %v1584, %v1641
        %v1711 = vmax.f32 %v1585, %v1645
        %v1712 = vmax.f32 %v1586, %v1647
        %v1713 = vmax.f32 %v1587, %v1646
        %v1714 = vmax.f32 %v1588, %v1650
        %v1715 = vmax.f32 %v1589, %v1652
        %v1716 = vmax.f32 %v1590, %v1651
        %v1717 = vmax.f32 %v1591, %v1655
        %v1718 = vmax.f32 %v1592, %v1657
        %v1719 = vmax.f32 %v1593, %v1656
        %v1720 = vmax.f32 %v1594, %v1660
        %v1721 = vmax.f32 %v1595, %v1662
        %v1722 = vmax.f32 %v1596, %v1661
        %v1723 = vmax.f32 %v1597, %v1665
        %v1724 = vmax.f32 %v1598, %v1667
        %v1725 = vmax.f32 %v1599, %v1666
        %v1726 = vmax.f32 %v1600, %v1670
        %v1727 = vmax.f32 %v1601, %v1672
        %v1728 = vmax.f32 %v1602, %v1671
        %v1729 = vmax.f32 %v1603, %v1675
        %v1730 = vmax.f32 %v1604, %v1677
        %v1731 = vmax.f32 %v1605, %v1676
        %1732 = vst.msk [vmem:[%s142] sm:$0xff] %vm650, %v1705
        %1733 = vst.msk [vmem:[%s142 + $0x8] sm:$0xff] %vm650, %v1706
        %1734 = vst.msk [vmem:[%s142 + $0x10] sm:$0x3f] %vm1553, %v1707
        %1735 = vst.msk [vmem:[%s142 + $0x18] sm:$0xff] %vm650, %v1708
        %1736 = vst.msk [vmem:[%s142 + $0x20] sm:$0xff] %vm650, %v1709
        %1737 = vst.msk [vmem:[%s142 + $0x28] sm:$0x3f] %vm1553, %v1710
        %1738 = vst.msk [vmem:[%s142 + $0x30] sm:$0xff] %vm650, %v1711
        %1739 = vst.msk [vmem:[%s142 + $0x38] sm:$0xff] %vm650, %v1712
        %1740 = vst.msk [vmem:[%s142 + $0x40] sm:$0x3f] %vm1553, %v1713
        %1741 = vst.msk [vmem:[%s142 + $0x48] sm:$0xff] %vm650, %v1714
        %1742 = vst.msk [vmem:[%s142 + $0x50] sm:$0xff] %vm650, %v1715
        %1743 = vst.msk [vmem:[%s142 + $0x58] sm:$0x3f] %vm1553, %v1716
        %1744 = vst.msk [vmem:[%s142 + $0x60] sm:$0xff] %vm650, %v1717
        %1745 = vst.msk [vmem:[%s142 + $0x68] sm:$0xff] %vm650, %v1718
        %1746 = vst.msk [vmem:[%s142 + $0x70] sm:$0x3f] %vm1553, %v1719
        %1747 = vst.msk [vmem:[%s142 + $0x78] sm:$0xff] %vm650, %v1720
        %1748 = vst.msk [vmem:[%s142 + $0x80] sm:$0xff] %vm650, %v1721
        %1749 = vst.msk [vmem:[%s142 + $0x88] sm:$0x3f] %vm1553, %v1722
        %1750 = vst.msk [vmem:[%s142 + $0x90] sm:$0xff] %vm650, %v1723
        %1751 = vst.msk [vmem:[%s142 + $0x98] sm:$0xff] %vm650, %v1724
        %1752 = vst.msk [vmem:[%s142 + $0xa0] sm:$0x3f] %vm1553, %v1725
        %1753 = vst.msk [vmem:[%s142 + $0xa8] sm:$0xff] %vm650, %v1726
        %1754 = vst.msk [vmem:[%s142 + $0xb0] sm:$0xff] %vm650, %v1727
        %1755 = vst.msk [vmem:[%s142 + $0xb8] sm:$0x3f] %vm1553, %v1728
        %1756 = vst.msk [vmem:[%s142 + $0xc0] sm:$0xff] %vm650, %v1729
        %1757 = vst.msk [vmem:[%s142 + $0xc8] sm:$0xff] %vm650, %v1730
        %1758 = vst.msk [vmem:[%s142 + $0xd0] sm:$0x3f] %vm1553, %v1731
        %s1759 = smul.u32 9, %s15
        %p1760 = scmp.lt.s32.totalorder %s1759, 26
        %s1761 = scalar_select %p1760, %s1759, 26
        %s1762 = smul.addr %s1761, 3
        %s1763 = smul.addr %s1762, 8
        %s1764 = scalar_lea.vmem %s1, %s1763
        // Predicated region
        $region29: #{model_forward.2} parent=23 // pred_check
          %p1765 = pneg %p59
        $region30: #{model_forward.2} parent=23 // pred_check_branch
          %1767 = sbr.rel (%p1765) target = $region32
        $region31: #{model_forward.2} parent=23 // pred_region
          %s1768 = smul.u32 9, %s15
        $region32: #{model_forward.2} parent=23 // pred_fallthru
          _
      $region24: #{model_forward.2} parent=5 // pred_fallthru
        _
      %p1769 = scmp.le.s32.totalorder 2, %s10
      // Predicated region
      $region33: #{model_forward.2} parent=5 // pred_check
        %p1770 = pneg %p1769
      $region34: #{model_forward.2} parent=5 // pred_check_branch
        %1772 = sbr.rel (%p1770) target = $region36
      $region35: #{model_forward.2} parent=5 // pred_region
        %s1773 = ssub.s32 %s10, 2
        // Predicated region
        $region37: #{model_forward.2} parent=35 // pred_check
          %p1774 = pneg %p65
        $region38: #{model_forward.2} parent=35 // pred_check_branch
          %1776 = sbr.rel (%p1774) target = $region40
        $region39: #{model_forward.2} parent=35 // pred_region
          %s1777 = smul.u32 9, %s16
          %p1778 = scmp.lt.s32.totalorder %s1777, 26
          %s1779 = scalar_select %p1778, %s1777, 26
          %s1780 = smul.addr %s1779, 3
          %s1781 = smul.addr %s1780, 8
          %s1782 = scalar_lea.vmem %s1, %s1781
        $region40: #{model_forward.2} parent=35 // pred_fallthru
          _
      $region36: #{model_forward.2} parent=5 // pred_fallthru
        _
    $region6: #{model_forward.2} parent=1 // loop_footer
      %s14 = sadd.s32 1, %s10
    $region7: #{model_forward.2} parent=1 // loop_footer_branch
      %9 = sbr.rel target = $region3
    $region8: #{model_forward.2} parent=1 // loop_exit
      _
    %1783 = vsyncpa [#allocation5], 1
    %s1784 = scalar_lea.sflag [#allocation5], 1
    %1785 = vsyncpa %s1784, 1

</llo_original>
